<compile_context>
chip_gen: v5e
topology: v5e:2x2
jax: 0.10.0
libtpu: 0.0.40
codegen_flags: <defaults>
</compile_context>

<pallas_src>
import jax
import jax.numpy as jnp
from jax.experimental import pallas as pl
from jax.experimental.pallas import tpu as pltpu

COMM_SIZE = 2
COMM_LEN = 8
EMB_SIZE = 16
HIDDEN = 32
MLP_DIM = 32


def _round_up(x, m):
    return (x + m - 1) // m * m


# ---------------------------------------------------------------------------
# Fused kernel: prologue (token table -> per-token input gates) + GRU loop.
# Returns the last hidden state for this batch tile.
# ---------------------------------------------------------------------------
def comm_kernel(x_ref, table_ref, w1_ref, b1_ref, w2_ref, b2_ref,
                wih_ref, bi_ref, whh_ref, bhn_ref, h_ref, gi_ref):
    S, B = x_ref.shape
    H = h_ref.shape[1]

    # ---- prologue (runs once per batch tile, not per step) ----------------
    # Token-value table through emb + MLP + input-side gate projection.
    c = jnp.maximum(
        jnp.dot(table_ref[...], w1_ref[...], preferred_element_type=jnp.float32)
        + b1_ref[...], 0.0)                                          # (2, 32)
    c = jnp.maximum(
        jnp.dot(c, w2_ref[...], preferred_element_type=jnp.float32)
        + b2_ref[...], 0.0)                                          # (2, 32)
    gtab = jnp.dot(c, wih_ref[...], preferred_element_type=jnp.float32) \
        + bi_ref[...]                                                # (2, 3H)

    g0 = gtab[0:1, :].reshape(1, 1, 3 * H)                           # token 0 row
    dg = gtab[1:2, :].reshape(1, 1, 3 * H) - g0                      # token 1 - 0

    # Hoisted per-token input gates (exact select for x in {0,1}):
    #   gi_all[t, b, :] = gtab[x[t, b], :]
    gi_ref[...] = x_ref[...][:, :, None] * dg + g0                   # (S, B, 3H)

    whh = whh_ref[...]                                               # (H, 3H)
    bhn = jnp.broadcast_to(bhn_ref[...], (B, H))                     # hoisted

    # ---- recurrence: one MXU dot per step, statically unrolled (S = 24) ---
    h = jnp.zeros((B, H), jnp.float32)
    for t in range(S):
        gi = gi_ref[t]                                               # (B, 3H) load
        gh = jnp.dot(h, whh, preferred_element_type=jnp.float32)     # (B, 3H)
        rz = jax.nn.sigmoid(gi[:, :2 * H] + gh[:, :2 * H])           # fused r|z
        r = rz[:, :H]
        z = rz[:, H:]
        n = jnp.tanh(gi[:, 2 * H:] + r * (gh[:, 2 * H:] + bhn))
        h = n + z * (h - n)                                          # == (1-z)n + zh
    h_ref[...] = h


# ---------------------------------------------------------------------------
# Parameters (deterministic in-script init; shapes follow the nn.Module)
# ---------------------------------------------------------------------------
def init_params(key):
    ks = jax.random.split(key, 8)
    p = {}
    p["table"] = jax.random.normal(ks[0], (COMM_SIZE, EMB_SIZE), jnp.float32)
    p["w1"] = jax.random.normal(ks[1], (EMB_SIZE, MLP_DIM), jnp.float32) / jnp.sqrt(EMB_SIZE)
    p["b1"] = jax.random.normal(ks[2], (1, MLP_DIM), jnp.float32) * 0.1
    p["w2"] = jax.random.normal(ks[3], (MLP_DIM, MLP_DIM), jnp.float32) / jnp.sqrt(MLP_DIM)
    p["b2"] = jax.random.normal(ks[4], (1, MLP_DIM), jnp.float32) * 0.1
    # GRU weights stored transposed: (in, 3H) / (H, 3H), gate order [r, z, n] (PyTorch)
    p["w_ih"] = jax.random.normal(ks[5], (MLP_DIM, 3 * HIDDEN), jnp.float32) / jnp.sqrt(HIDDEN)
    p["w_hh"] = jax.random.normal(ks[6], (HIDDEN, 3 * HIDDEN), jnp.float32) / jnp.sqrt(HIDDEN)
    b = jax.random.normal(ks[7], (2, 3 * HIDDEN), jnp.float32) * 0.1
    p["b_ih"], p["b_hh"] = b[0], b[1]
    return p


# ---------------------------------------------------------------------------
# Forward (wrapper: only cheap parameter / input re-packing outside the kernel)
# ---------------------------------------------------------------------------
def comm_module_forward(x, p, b_tile_max=128):
    """x: (B, N, comm_len) int in {0,1}.  Returns (B, HIDDEN)."""
    B, N, L = x.shape
    assert L == COMM_LEN
    S = N * L
    H = HIDDEN

    # Clamp to {0,1}: the in-kernel select is only an embedding lookup for
    # binary tokens (matches the module's discrete_comm contract).
    xs = jnp.clip(x.reshape(B, S), 0, 1).astype(jnp.float32)

    # Batch tiling: <=128 rows per tile (fills MXU rows on v5e/v6e/v7x without
    # spilling the 64-vreg file in the 24-step unroll).
    if B <= b_tile_max:
        b_tile = max(8, _round_up(B, 8))
        b_pad = b_tile
    else:
        b_tile = b_tile_max
        b_pad = _round_up(B, b_tile)
    if b_pad != B:
        xs = jnp.pad(xs, ((0, b_pad - B), (0, 0)))
    xf = xs.T                                           # (S, b_pad), batch on lanes

    # Gate-bias packing (pure parameter math, done once):
    #   r/z gates take b_ih + b_hh; the n gate keeps b_in in the token table and
    #   b_hn separately inside the r*(...) term — matching PyTorch's GRU.
    bi = jnp.concatenate(
        [p["b_ih"][:2 * H] + p["b_hh"][:2 * H], p["b_ih"][2 * H:]]).reshape(1, 3 * H)
    bhn = p["b_hh"][2 * H:].reshape(1, H)

    const = lambda b: (0, 0)
    grid_spec = pltpu.PrefetchScalarGridSpec(
        num_scalar_prefetch=0,
        grid=(b_pad // b_tile,),
        in_specs=[
            pl.BlockSpec((S, b_tile), lambda b: (0, b)),
            pl.BlockSpec((COMM_SIZE, EMB_SIZE), const),
            pl.BlockSpec((EMB_SIZE, MLP_DIM), const),
            pl.BlockSpec((1, MLP_DIM), const),
            pl.BlockSpec((MLP_DIM, MLP_DIM), const),
            pl.BlockSpec((1, MLP_DIM), const),
            pl.BlockSpec((MLP_DIM, 3 * H), const),
            pl.BlockSpec((1, 3 * H), const),
            pl.BlockSpec((H, 3 * H), const),
            pl.BlockSpec((1, H), const),
        ],
        out_specs=pl.BlockSpec((b_tile, H), lambda b: (b, 0)),
        scratch_shapes=[pltpu.VMEM((S, b_tile, 3 * H), jnp.float32)],
    )

    hidden = pl.pallas_call(
        comm_kernel,
        out_shape=jax.ShapeDtypeStruct((b_pad, H), jnp.float32),
        grid_spec=grid_spec,
        compiler_params=pltpu.CompilerParams(
            dimension_semantics=("parallel",)),
    )(xf, p["table"], p["w1"], p["b1"], p["w2"], p["b2"],
      p["w_ih"], bi, p["w_hh"], bhn)
    return hidden[:B]


# ---------------------------------------------------------------------------
# Pure-JAX reference (mirrors the PyTorch forward exactly)
# ---------------------------------------------------------------------------
def ref_forward(x, p):
    B, N, L = x.shape
    emb = p["table"][x]                              # nn.Embedding
    h = jax.nn.relu(emb @ p["w1"] + p["b1"][0])
    h = jax.nn.relu(h @ p["w2"] + p["b2"][0])
    seq = h.reshape(B, N * L, MLP_DIM)
    H = HIDDEN
    hstate = jnp.zeros((B, H), jnp.float32)
    for t in range(N * L):
        xt = seq[:, t, :]
        gi = xt @ p["w_ih"] + p["b_ih"]
        gh = hstate @ p["w_hh"] + p["b_hh"]
        r = jax.nn.sigmoid(gi[:, :H] + gh[:, :H])
        z = jax.nn.sigmoid(gi[:, H:2 * H] + gh[:, H:2 * H])
        n = jnp.tanh(gi[:, 2 * H:] + r * gh[:, 2 * H:])
        hstate = (1.0 - z) * n + z * hstate
    return hstate


if __name__ == "__main__":
    key = jax.random.PRNGKey(0)
    k_param, k_x = jax.random.split(key)
    params = init_params(k_param)

    B, N = 2, 3                                      # batch, num_agents
    x = jax.random.bernoulli(k_x, 0.5, (B, N, COMM_LEN)).astype(jnp.int32)

    out = jax.block_until_ready(comm_module_forward(x, params))
    ref = ref_forward(x, params)
    assert out.shape == (B, HIDDEN)
    assert jnp.allclose(out, ref, atol=1e-4, rtol=1e-4), (out, ref)

    # TODO(synk): non-discrete (`fc`) and `comm_rnn=False` config branches are
    # not exercised; this script implements the discrete_comm + comm_rnn path.
    # TODO(synk): optional bf16 cast of h / w_hh / gi table for the per-step
    # dot (v6e) would allow B_TILE>128 without spills; kept f32 for tight
    # numerical agreement with the reference.
    print("KERNEL_OK")
</pallas_src>

<mosaic_0001>
module attributes {stable_mosaic.version = 11 : i64} {
  func.func @comm_kernel(%arg0: i32, %arg1: memref<24x8xf32, #tpu.memory_space<vmem>>, %arg2: memref<2x16xf32, #tpu.memory_space<vmem>>, %arg3: memref<16x32xf32, #tpu.memory_space<vmem>>, %arg4: memref<1x32xf32, #tpu.memory_space<vmem>>, %arg5: memref<32x32xf32, #tpu.memory_space<vmem>>, %arg6: memref<1x32xf32, #tpu.memory_space<vmem>>, %arg7: memref<32x96xf32, #tpu.memory_space<vmem>>, %arg8: memref<1x96xf32, #tpu.memory_space<vmem>>, %arg9: memref<32x96xf32, #tpu.memory_space<vmem>>, %arg10: memref<1x32xf32, #tpu.memory_space<vmem>>, %arg11: memref<8x32xf32, #tpu.memory_space<vmem>>, %arg12: memref<24x8x96xf32, #tpu.memory_space<vmem>>) attributes {dimension_semantics = [#tpu.dimension_semantics<parallel>], iteration_bounds = array<i64: 1>, scalar_prefetch = 0 : i64, scratch_operands = 1 : i64, tpu.core_type = #tpu.core_type<tc>, window_params = [{transform_indices = @transform_0, window_bounds = array<i64: 24, 8>}, {pipeline_mode = #tpu.pipeline_mode<synchronous>, transform_indices = @transform_1, window_bounds = array<i64: 2, 16>}, {pipeline_mode = #tpu.pipeline_mode<synchronous>, transform_indices = @transform_2, window_bounds = array<i64: 16, 32>}, {pipeline_mode = #tpu.pipeline_mode<synchronous>, transform_indices = @transform_3, window_bounds = array<i64: 1, 32>}, {pipeline_mode = #tpu.pipeline_mode<synchronous>, transform_indices = @transform_4, window_bounds = array<i64: 32, 32>}, {pipeline_mode = #tpu.pipeline_mode<synchronous>, transform_indices = @transform_5, window_bounds = array<i64: 1, 32>}, {pipeline_mode = #tpu.pipeline_mode<synchronous>, transform_indices = @transform_6, window_bounds = array<i64: 32, 96>}, {pipeline_mode = #tpu.pipeline_mode<synchronous>, transform_indices = @transform_7, window_bounds = array<i64: 1, 96>}, {pipeline_mode = #tpu.pipeline_mode<synchronous>, transform_indices = @transform_8, window_bounds = array<i64: 32, 96>}, {pipeline_mode = #tpu.pipeline_mode<synchronous>, transform_indices = @transform_9, window_bounds = array<i64: 1, 32>}, {transform_indices = @transform_10, window_bounds = array<i64: 8, 32>}]} {
    %c0 = arith.constant 0 : index
    %c0_0 = arith.constant 0 : index
    %0 = vector.load %arg2[%c0, %c0_0] : memref<2x16xf32, #tpu.memory_space<vmem>>, vector<2x16xf32>
    %c0_1 = arith.constant 0 : index
    %c0_2 = arith.constant 0 : index
    %1 = vector.load %arg3[%c0_1, %c0_2] : memref<16x32xf32, #tpu.memory_space<vmem>>, vector<16x32xf32>
    %cst = arith.constant dense<0.000000e+00> : vector<2x32xf32>
    %2 = tpu.matmul %0, %1, %cst {dimension_numbers = #tpu.dot_dimension_numbers<[1], [0], [0], [1], [0, 0, 1, 1], [], []>} : vector<2x16xf32>, vector<16x32xf32>, vector<2x32xf32> -> vector<2x32xf32>
    %c0_3 = arith.constant 0 : index
    %c0_4 = arith.constant 0 : index
    %3 = vector.load %arg4[%c0_3, %c0_4] : memref<1x32xf32, #tpu.memory_space<vmem>>, vector<1x32xf32>
    %4 = vector.broadcast %3 : vector<1x32xf32> to vector<2x32xf32>
    %5 = arith.addf %2, %4 : vector<2x32xf32>
    %cst_5 = arith.constant 0.000000e+00 : f32
    %6 = vector.broadcast %cst_5 : f32 to vector<2x32xf32>
    %7 = arith.maximumf %5, %6 : vector<2x32xf32>
    %c0_6 = arith.constant 0 : index
    %c0_7 = arith.constant 0 : index
    %8 = vector.load %arg5[%c0_6, %c0_7] : memref<32x32xf32, #tpu.memory_space<vmem>>, vector<32x32xf32>
    %cst_8 = arith.constant dense<0.000000e+00> : vector<2x32xf32>
    %9 = tpu.matmul %7, %8, %cst_8 {dimension_numbers = #tpu.dot_dimension_numbers<[1], [0], [0], [1], [0, 0, 1, 1], [], []>} : vector<2x32xf32>, vector<32x32xf32>, vector<2x32xf32> -> vector<2x32xf32>
    %c0_9 = arith.constant 0 : index
    %c0_10 = arith.constant 0 : index
    %10 = vector.load %arg6[%c0_9, %c0_10] : memref<1x32xf32, #tpu.memory_space<vmem>>, vector<1x32xf32>
    %11 = vector.broadcast %10 : vector<1x32xf32> to vector<2x32xf32>
    %12 = arith.addf %9, %11 : vector<2x32xf32>
    %cst_11 = arith.constant 0.000000e+00 : f32
    %13 = vector.broadcast %cst_11 : f32 to vector<2x32xf32>
    %14 = arith.maximumf %12, %13 : vector<2x32xf32>
    %c0_12 = arith.constant 0 : index
    %c0_13 = arith.constant 0 : index
    %15 = vector.load %arg7[%c0_12, %c0_13] : memref<32x96xf32, #tpu.memory_space<vmem>>, vector<32x96xf32>
    %cst_14 = arith.constant dense<0.000000e+00> : vector<2x96xf32>
    %16 = tpu.matmul %14, %15, %cst_14 {dimension_numbers = #tpu.dot_dimension_numbers<[1], [0], [0], [1], [0, 0, 1, 1], [], []>} : vector<2x32xf32>, vector<32x96xf32>, vector<2x96xf32> -> vector<2x96xf32>
    %c0_15 = arith.constant 0 : index
    %c0_16 = arith.constant 0 : index
    %17 = vector.load %arg8[%c0_15, %c0_16] : memref<1x96xf32, #tpu.memory_space<vmem>>, vector<1x96xf32>
    %18 = vector.broadcast %17 : vector<1x96xf32> to vector<2x96xf32>
    %19 = arith.addf %16, %18 : vector<2x96xf32>
    %20 = vector.extract_strided_slice %19 {offsets = [0, 0], sizes = [1, 96], strides = [1, 1]} : vector<2x96xf32> to vector<1x96xf32>
    %21 = vector.shape_cast %20 : vector<1x96xf32> to vector<1x1x96xf32>
    %22 = vector.extract_strided_slice %19 {offsets = [1, 0], sizes = [1, 96], strides = [1, 1]} : vector<2x96xf32> to vector<1x96xf32>
    %23 = vector.shape_cast %22 : vector<1x96xf32> to vector<1x1x96xf32>
    %24 = arith.subf %23, %21 : vector<1x1x96xf32>
    %c0_17 = arith.constant 0 : index
    %c0_18 = arith.constant 0 : index
    %25 = vector.load %arg1[%c0_17, %c0_18] : memref<24x8xf32, #tpu.memory_space<vmem>>, vector<24x8xf32>
    %26 = vector.shape_cast %25 : vector<24x8xf32> to vector<24x8x1xf32>
    %27 = vector.broadcast %26 : vector<24x8x1xf32> to vector<24x8x96xf32>
    %28 = vector.broadcast %24 : vector<1x1x96xf32> to vector<24x8x96xf32>
    %29 = arith.mulf %27, %28 : vector<24x8x96xf32>
    %30 = vector.broadcast %21 : vector<1x1x96xf32> to vector<24x8x96xf32>
    %31 = arith.addf %29, %30 : vector<24x8x96xf32>
    %c0_19 = arith.constant 0 : index
    %c0_20 = arith.constant 0 : index
    %c0_21 = arith.constant 0 : index
    %32 = vector.load %arg12[%c0_19, %c0_20, %c0_21] : memref<24x8x96xf32, #tpu.memory_space<vmem>>, vector<24x8x96xf32>
    tpu.vector_store %arg12[%c0_19, %c0_20, %c0_21], %31 {strides = array<i32>} : memref<24x8x96xf32, #tpu.memory_space<vmem>>, vector<24x8x96xf32>,
    %c0_22 = arith.constant 0 : index
    %c0_23 = arith.constant 0 : index
    %33 = vector.load %arg9[%c0_22, %c0_23] : memref<32x96xf32, #tpu.memory_space<vmem>>, vector<32x96xf32>
    %c0_24 = arith.constant 0 : index
    %c0_25 = arith.constant 0 : index
    %34 = vector.load %arg10[%c0_24, %c0_25] : memref<1x32xf32, #tpu.memory_space<vmem>>, vector<1x32xf32>
    %35 = vector.shape_cast %34 : vector<1x32xf32> to vector<1x32xf32>
    %36 = vector.broadcast %35 : vector<1x32xf32> to vector<8x32xf32>
    %cst_26 = arith.constant 0.000000e+00 : f32
    %37 = vector.broadcast %cst_26 : f32 to vector<8x32xf32>
    %c0_27 = arith.constant 0 : index
    %c0_28 = arith.constant 0 : index
    %c0_29 = arith.constant 0 : index
    %38 = vector.load %arg12[%c0_27, %c0_28, %c0_29] : memref<24x8x96xf32, #tpu.memory_space<vmem>>, vector<1x8x96xf32>
    %39 = vector.shape_cast %38 : vector<1x8x96xf32> to vector<8x96xf32>
    %cst_30 = arith.constant dense<0.000000e+00> : vector<8x96xf32>
    %40 = tpu.matmul %37, %33, %cst_30 {dimension_numbers = #tpu.dot_dimension_numbers<[1], [0], [0], [1], [0, 0, 1, 1], [], []>} : vector<8x32xf32>, vector<32x96xf32>, vector<8x96xf32> -> vector<8x96xf32>
    %41 = vector.extract_strided_slice %39 {offsets = [0, 0], sizes = [8, 64], strides = [1, 1]} : vector<8x96xf32> to vector<8x64xf32>
    %42 = vector.extract_strided_slice %40 {offsets = [0, 0], sizes = [8, 64], strides = [1, 1]} : vector<8x96xf32> to vector<8x64xf32>
    %43 = arith.addf %41, %42 : vector<8x64xf32>
    %44 = arith.negf %43 : vector<8x64xf32>
    %45 = math.exp %44 : vector<8x64xf32>
    %cst_31 = arith.constant 1.000000e+00 : f32
    %46 = vector.broadcast %cst_31 : f32 to vector<8x64xf32>
    %47 = arith.addf %46, %45 : vector<8x64xf32>
    %48 = arith.divf %46, %47 : vector<8x64xf32>
    %49 = vector.extract_strided_slice %48 {offsets = [0, 0], sizes = [8, 32], strides = [1, 1]} : vector<8x64xf32> to vector<8x32xf32>
    %50 = vector.extract_strided_slice %48 {offsets = [0, 32], sizes = [8, 32], strides = [1, 1]} : vector<8x64xf32> to vector<8x32xf32>
    %51 = vector.extract_strided_slice %39 {offsets = [0, 64], sizes = [8, 32], strides = [1, 1]} : vector<8x96xf32> to vector<8x32xf32>
    %52 = vector.extract_strided_slice %40 {offsets = [0, 64], sizes = [8, 32], strides = [1, 1]} : vector<8x96xf32> to vector<8x32xf32>
    %53 = arith.addf %52, %36 : vector<8x32xf32>
    %54 = arith.mulf %49, %53 : vector<8x32xf32>
    %55 = arith.addf %51, %54 : vector<8x32xf32>
    %56 = math.tanh %55 : vector<8x32xf32>
    %57 = arith.subf %37, %56 : vector<8x32xf32>
    %58 = arith.mulf %50, %57 : vector<8x32xf32>
    %59 = arith.addf %56, %58 : vector<8x32xf32>
    %c1 = arith.constant 1 : index
    %c0_32 = arith.constant 0 : index
    %c0_33 = arith.constant 0 : index
    %60 = vector.load %arg12[%c1, %c0_32, %c0_33] : memref<24x8x96xf32, #tpu.memory_space<vmem>>, vector<1x8x96xf32>
    %61 = vector.shape_cast %60 : vector<1x8x96xf32> to vector<8x96xf32>
    %cst_34 = arith.constant dense<0.000000e+00> : vector<8x96xf32>
    %62 = tpu.matmul %59, %33, %cst_34 {dimension_numbers = #tpu.dot_dimension_numbers<[1], [0], [0], [1], [0, 0, 1, 1], [], []>} : vector<8x32xf32>, vector<32x96xf32>, vector<8x96xf32> -> vector<8x96xf32>
    %63 = vector.extract_strided_slice %61 {offsets = [0, 0], sizes = [8, 64], strides = [1, 1]} : vector<8x96xf32> to vector<8x64xf32>
    %64 = vector.extract_strided_slice %62 {offsets = [0, 0], sizes = [8, 64], strides = [1, 1]} : vector<8x96xf32> to vector<8x64xf32>
    %65 = arith.addf %63, %64 : vector<8x64xf32>
    %66 = arith.negf %65 : vector<8x64xf32>
    %67 = math.exp %66 : vector<8x64xf32>
    %cst_35 = arith.constant 1.000000e+00 : f32
    %68 = vector.broadcast %cst_35 : f32 to vector<8x64xf32>
    %69 = arith.addf %68, %67 : vector<8x64xf32>
    %70 = arith.divf %68, %69 : vector<8x64xf32>
    %71 = vector.extract_strided_slice %70 {offsets = [0, 0], sizes = [8, 32], strides = [1, 1]} : vector<8x64xf32> to vector<8x32xf32>
    %72 = vector.extract_strided_slice %70 {offsets = [0, 32], sizes = [8, 32], strides = [1, 1]} : vector<8x64xf32> to vector<8x32xf32>
    %73 = vector.extract_strided_slice %61 {offsets = [0, 64], sizes = [8, 32], strides = [1, 1]} : vector<8x96xf32> to vector<8x32xf32>
    %74 = vector.extract_strided_slice %62 {offsets = [0, 64], sizes = [8, 32], strides = [1, 1]} : vector<8x96xf32> to vector<8x32xf32>
    %75 = arith.addf %74, %36 : vector<8x32xf32>
    %76 = arith.mulf %71, %75 : vector<8x32xf32>
    %77 = arith.addf %73, %76 : vector<8x32xf32>
    %78 = math.tanh %77 : vector<8x32xf32>
    %79 = arith.subf %59, %78 : vector<8x32xf32>
    %80 = arith.mulf %72, %79 : vector<8x32xf32>
    %81 = arith.addf %78, %80 : vector<8x32xf32>
    %c2 = arith.constant 2 : index
    %c0_36 = arith.constant 0 : index
    %c0_37 = arith.constant 0 : index
    %82 = vector.load %arg12[%c2, %c0_36, %c0_37] : memref<24x8x96xf32, #tpu.memory_space<vmem>>, vector<1x8x96xf32>
    %83 = vector.shape_cast %82 : vector<1x8x96xf32> to vector<8x96xf32>
    %cst_38 = arith.constant dense<0.000000e+00> : vector<8x96xf32>
    %84 = tpu.matmul %81, %33, %cst_38 {dimension_numbers = #tpu.dot_dimension_numbers<[1], [0], [0], [1], [0, 0, 1, 1], [], []>} : vector<8x32xf32>, vector<32x96xf32>, vector<8x96xf32> -> vector<8x96xf32>
    %85 = vector.extract_strided_slice %83 {offsets = [0, 0], sizes = [8, 64], strides = [1, 1]} : vector<8x96xf32> to vector<8x64xf32>
    %86 = vector.extract_strided_slice %84 {offsets = [0, 0], sizes = [8, 64], strides = [1, 1]} : vector<8x96xf32> to vector<8x64xf32>
    %87 = arith.addf %85, %86 : vector<8x64xf32>
    %88 = arith.negf %87 : vector<8x64xf32>
    %89 = math.exp %88 : vector<8x64xf32>
    %cst_39 = arith.constant 1.000000e+00 : f32
    %90 = vector.broadcast %cst_39 : f32 to vector<8x64xf32>
    %91 = arith.addf %90, %89 : vector<8x64xf32>
    %92 = arith.divf %90, %91 : vector<8x64xf32>
    %93 = vector.extract_strided_slice %92 {offsets = [0, 0], sizes = [8, 32], strides = [1, 1]} : vector<8x64xf32> to vector<8x32xf32>
    %94 = vector.extract_strided_slice %92 {offsets = [0, 32], sizes = [8, 32], strides = [1, 1]} : vector<8x64xf32> to vector<8x32xf32>
    %95 = vector.extract_strided_slice %83 {offsets = [0, 64], sizes = [8, 32], strides = [1, 1]} : vector<8x96xf32> to vector<8x32xf32>
    %96 = vector.extract_strided_slice %84 {offsets = [0, 64], sizes = [8, 32], strides = [1, 1]} : vector<8x96xf32> to vector<8x32xf32>
    %97 = arith.addf %96, %36 : vector<8x32xf32>
    %98 = arith.mulf %93, %97 : vector<8x32xf32>
    %99 = arith.addf %95, %98 : vector<8x32xf32>
    %100 = math.tanh %99 : vector<8x32xf32>
    %101 = arith.subf %81, %100 : vector<8x32xf32>
    %102 = arith.mulf %94, %101 : vector<8x32xf32>
    %103 = arith.addf %100, %102 : vector<8x32xf32>
    %c3 = arith.constant 3 : index
    %c0_40 = arith.constant 0 : index
    %c0_41 = arith.constant 0 : index
    %104 = vector.load %arg12[%c3, %c0_40, %c0_41] : memref<24x8x96xf32, #tpu.memory_space<vmem>>, vector<1x8x96xf32>
    %105 = vector.shape_cast %104 : vector<1x8x96xf32> to vector<8x96xf32>
    %cst_42 = arith.constant dense<0.000000e+00> : vector<8x96xf32>
    %106 = tpu.matmul %103, %33, %cst_42 {dimension_numbers = #tpu.dot_dimension_numbers<[1], [0], [0], [1], [0, 0, 1, 1], [], []>} : vector<8x32xf32>, vector<32x96xf32>, vector<8x96xf32> -> vector<8x96xf32>
    %107 = vector.extract_strided_slice %105 {offsets = [0, 0], sizes = [8, 64], strides = [1, 1]} : vector<8x96xf32> to vector<8x64xf32>
    %108 = vector.extract_strided_slice %106 {offsets = [0, 0], sizes = [8, 64], strides = [1, 1]} : vector<8x96xf32> to vector<8x64xf32>
    %109 = arith.addf %107, %108 : vector<8x64xf32>
    %110 = arith.negf %109 : vector<8x64xf32>
    %111 = math.exp %110 : vector<8x64xf32>
    %cst_43 = arith.constant 1.000000e+00 : f32
    %112 = vector.broadcast %cst_43 : f32 to vector<8x64xf32>
    %113 = arith.addf %112, %111 : vector<8x64xf32>
    %114 = arith.divf %112, %113 : vector<8x64xf32>
    %115 = vector.extract_strided_slice %114 {offsets = [0, 0], sizes = [8, 32], strides = [1, 1]} : vector<8x64xf32> to vector<8x32xf32>
    %116 = vector.extract_strided_slice %114 {offsets = [0, 32], sizes = [8, 32], strides = [1, 1]} : vector<8x64xf32> to vector<8x32xf32>
    %117 = vector.extract_strided_slice %105 {offsets = [0, 64], sizes = [8, 32], strides = [1, 1]} : vector<8x96xf32> to vector<8x32xf32>
    %118 = vector.extract_strided_slice %106 {offsets = [0, 64], sizes = [8, 32], strides = [1, 1]} : vector<8x96xf32> to vector<8x32xf32>
    %119 = arith.addf %118, %36 : vector<8x32xf32>
    %120 = arith.mulf %115, %119 : vector<8x32xf32>
    %121 = arith.addf %117, %120 : vector<8x32xf32>
    %122 = math.tanh %121 : vector<8x32xf32>
    %123 = arith.subf %103, %122 : vector<8x32xf32>
    %124 = arith.mulf %116, %123 : vector<8x32xf32>
    %125 = arith.addf %122, %124 : vector<8x32xf32>
    %c4 = arith.constant 4 : index
    %c0_44 = arith.constant 0 : index
    %c0_45 = arith.constant 0 : index
    %126 = vector.load %arg12[%c4, %c0_44, %c0_45] : memref<24x8x96xf32, #tpu.memory_space<vmem>>, vector<1x8x96xf32>
    %127 = vector.shape_cast %126 : vector<1x8x96xf32> to vector<8x96xf32>
    %cst_46 = arith.constant dense<0.000000e+00> : vector<8x96xf32>
    %128 = tpu.matmul %125, %33, %cst_46 {dimension_numbers = #tpu.dot_dimension_numbers<[1], [0], [0], [1], [0, 0, 1, 1], [], []>} : vector<8x32xf32>, vector<32x96xf32>, vector<8x96xf32> -> vector<8x96xf32>
    %129 = vector.extract_strided_slice %127 {offsets = [0, 0], sizes = [8, 64], strides = [1, 1]} : vector<8x96xf32> to vector<8x64xf32>
    %130 = vector.extract_strided_slice %128 {offsets = [0, 0], sizes = [8, 64], strides = [1, 1]} : vector<8x96xf32> to vector<8x64xf32>
    %131 = arith.addf %129, %130 : vector<8x64xf32>
    %132 = arith.negf %131 : vector<8x64xf32>
    %133 = math.exp %132 : vector<8x64xf32>
    %cst_47 = arith.constant 1.000000e+00 : f32
    %134 = vector.broadcast %cst_47 : f32 to vector<8x64xf32>
    %135 = arith.addf %134, %133 : vector<8x64xf32>
    %136 = arith.divf %134, %135 : vector<8x64xf32>
    %137 = vector.extract_strided_slice %136 {offsets = [0, 0], sizes = [8, 32], strides = [1, 1]} : vector<8x64xf32> to vector<8x32xf32>
    %138 = vector.extract_strided_slice %136 {offsets = [0, 32], sizes = [8, 32], strides = [1, 1]} : vector<8x64xf32> to vector<8x32xf32>
    %139 = vector.extract_strided_slice %127 {offsets = [0, 64], sizes = [8, 32], strides = [1, 1]} : vector<8x96xf32> to vector<8x32xf32>
    %140 = vector.extract_strided_slice %128 {offsets = [0, 64], sizes = [8, 32], strides = [1, 1]} : vector<8x96xf32> to vector<8x32xf32>
    %141 = arith.addf %140, %36 : vector<8x32xf32>
    %142 = arith.mulf %137, %141 : vector<8x32xf32>
    %143 = arith.addf %139, %142 : vector<8x32xf32>
    %144 = math.tanh %143 : vector<8x32xf32>
    %145 = arith.subf %125, %144 : vector<8x32xf32>
    %146 = arith.mulf %138, %145 : vector<8x32xf32>
    %147 = arith.addf %144, %146 : vector<8x32xf32>
    %c5 = arith.constant 5 : index
    %c0_48 = arith.constant 0 : index
    %c0_49 = arith.constant 0 : index
    %148 = vector.load %arg12[%c5, %c0_48, %c0_49] : memref<24x8x96xf32, #tpu.memory_space<vmem>>, vector<1x8x96xf32>
    %149 = vector.shape_cast %148 : vector<1x8x96xf32> to vector<8x96xf32>
    %cst_50 = arith.constant dense<0.000000e+00> : vector<8x96xf32>
    %150 = tpu.matmul %147, %33, %cst_50 {dimension_numbers = #tpu.dot_dimension_numbers<[1], [0], [0], [1], [0, 0, 1, 1], [], []>} : vector<8x32xf32>, vector<32x96xf32>, vector<8x96xf32> -> vector<8x96xf32>
    %151 = vector.extract_strided_slice %149 {offsets = [0, 0], sizes = [8, 64], strides = [1, 1]} : vector<8x96xf32> to vector<8x64xf32>
    %152 = vector.extract_strided_slice %150 {offsets = [0, 0], sizes = [8, 64], strides = [1, 1]} : vector<8x96xf32> to vector<8x64xf32>
    %153 = arith.addf %151, %152 : vector<8x64xf32>
    %154 = arith.negf %153 : vector<8x64xf32>
    %155 = math.exp %154 : vector<8x64xf32>
    %cst_51 = arith.constant 1.000000e+00 : f32
    %156 = vector.broadcast %cst_51 : f32 to vector<8x64xf32>
    %157 = arith.addf %156, %155 : vector<8x64xf32>
    %158 = arith.divf %156, %157 : vector<8x64xf32>
    %159 = vector.extract_strided_slice %158 {offsets = [0, 0], sizes = [8, 32], strides = [1, 1]} : vector<8x64xf32> to vector<8x32xf32>
    %160 = vector.extract_strided_slice %158 {offsets = [0, 32], sizes = [8, 32], strides = [1, 1]} : vector<8x64xf32> to vector<8x32xf32>
    %161 = vector.extract_strided_slice %149 {offsets = [0, 64], sizes = [8, 32], strides = [1, 1]} : vector<8x96xf32> to vector<8x32xf32>
    %162 = vector.extract_strided_slice %150 {offsets = [0, 64], sizes = [8, 32], strides = [1, 1]} : vector<8x96xf32> to vector<8x32xf32>
    %163 = arith.addf %162, %36 : vector<8x32xf32>
    %164 = arith.mulf %159, %163 : vector<8x32xf32>
    %165 = arith.addf %161, %164 : vector<8x32xf32>
    %166 = math.tanh %165 : vector<8x32xf32>
    %167 = arith.subf %147, %166 : vector<8x32xf32>
    %168 = arith.mulf %160, %167 : vector<8x32xf32>
    %169 = arith.addf %166, %168 : vector<8x32xf32>
    %c6 = arith.constant 6 : index
    %c0_52 = arith.constant 0 : index
    %c0_53 = arith.constant 0 : index
    %170 = vector.load %arg12[%c6, %c0_52, %c0_53] : memref<24x8x96xf32, #tpu.memory_space<vmem>>, vector<1x8x96xf32>
    %171 = vector.shape_cast %170 : vector<1x8x96xf32> to vector<8x96xf32>
    %cst_54 = arith.constant dense<0.000000e+00> : vector<8x96xf32>
    %172 = tpu.matmul %169, %33, %cst_54 {dimension_numbers = #tpu.dot_dimension_numbers<[1], [0], [0], [1], [0, 0, 1, 1], [], []>} : vector<8x32xf32>, vector<32x96xf32>, vector<8x96xf32> -> vector<8x96xf32>
    %173 = vector.extract_strided_slice %171 {offsets = [0, 0], sizes = [8, 64], strides = [1, 1]} : vector<8x96xf32> to vector<8x64xf32>
    %174 = vector.extract_strided_slice %172 {offsets = [0, 0], sizes = [8, 64], strides = [1, 1]} : vector<8x96xf32> to vector<8x64xf32>
    %175 = arith.addf %173, %174 : vector<8x64xf32>
    %176 = arith.negf %175 : vector<8x64xf32>
    %177 = math.exp %176 : vector<8x64xf32>
    %cst_55 = arith.constant 1.000000e+00 : f32
    %178 = vector.broadcast %cst_55 : f32 to vector<8x64xf32>
    %179 = arith.addf %178, %177 : vector<8x64xf32>
    %180 = arith.divf %178, %179 : vector<8x64xf32>
    %181 = vector.extract_strided_slice %180 {offsets = [0, 0], sizes = [8, 32], strides = [1, 1]} : vector<8x64xf32> to vector<8x32xf32>
    %182 = vector.extract_strided_slice %180 {offsets = [0, 32], sizes = [8, 32], strides = [1, 1]} : vector<8x64xf32> to vector<8x32xf32>
    %183 = vector.extract_strided_slice %171 {offsets = [0, 64], sizes = [8, 32], strides = [1, 1]} : vector<8x96xf32> to vector<8x32xf32>
    %184 = vector.extract_strided_slice %172 {offsets = [0, 64], sizes = [8, 32], strides = [1, 1]} : vector<8x96xf32> to vector<8x32xf32>
    %185 = arith.addf %184, %36 : vector<8x32xf32>
    %186 = arith.mulf %181, %185 : vector<8x32xf32>
    %187 = arith.addf %183, %186 : vector<8x32xf32>
    %188 = math.tanh %187 : vector<8x32xf32>
    %189 = arith.subf %169, %188 : vector<8x32xf32>
    %190 = arith.mulf %182, %189 : vector<8x32xf32>
    %191 = arith.addf %188, %190 : vector<8x32xf32>
    %c7 = arith.constant 7 : index
    %c0_56 = arith.constant 0 : index
    %c0_57 = arith.constant 0 : index
    %192 = vector.load %arg12[%c7, %c0_56, %c0_57] : memref<24x8x96xf32, #tpu.memory_space<vmem>>, vector<1x8x96xf32>
    %193 = vector.shape_cast %192 : vector<1x8x96xf32> to vector<8x96xf32>
    %cst_58 = arith.constant dense<0.000000e+00> : vector<8x96xf32>
    %194 = tpu.matmul %191, %33, %cst_58 {dimension_numbers = #tpu.dot_dimension_numbers<[1], [0], [0], [1], [0, 0, 1, 1], [], []>} : vector<8x32xf32>, vector<32x96xf32>, vector<8x96xf32> -> vector<8x96xf32>
    %195 = vector.extract_strided_slice %193 {offsets = [0, 0], sizes = [8, 64], strides = [1, 1]} : vector<8x96xf32> to vector<8x64xf32>
    %196 = vector.extract_strided_slice %194 {offsets = [0, 0], sizes = [8, 64], strides = [1, 1]} : vector<8x96xf32> to vector<8x64xf32>
    %197 = arith.addf %195, %196 : vector<8x64xf32>
    %198 = arith.negf %197 : vector<8x64xf32>
    %199 = math.exp %198 : vector<8x64xf32>
    %cst_59 = arith.constant 1.000000e+00 : f32
    %200 = vector.broadcast %cst_59 : f32 to vector<8x64xf32>
    %201 = arith.addf %200, %199 : vector<8x64xf32>
    %202 = arith.divf %200, %201 : vector<8x64xf32>
    %203 = vector.extract_strided_slice %202 {offsets = [0, 0], sizes = [8, 32], strides = [1, 1]} : vector<8x64xf32> to vector<8x32xf32>
    %204 = vector.extract_strided_slice %202 {offsets = [0, 32], sizes = [8, 32], strides = [1, 1]} : vector<8x64xf32> to vector<8x32xf32>
    %205 = vector.extract_strided_slice %193 {offsets = [0, 64], sizes = [8, 32], strides = [1, 1]} : vector<8x96xf32> to vector<8x32xf32>
    %206 = vector.extract_strided_slice %194 {offsets = [0, 64], sizes = [8, 32], strides = [1, 1]} : vector<8x96xf32> to vector<8x32xf32>
    %207 = arith.addf %206, %36 : vector<8x32xf32>
    %208 = arith.mulf %203, %207 : vector<8x32xf32>
    %209 = arith.addf %205, %208 : vector<8x32xf32>
    %210 = math.tanh %209 : vector<8x32xf32>
    %211 = arith.subf %191, %210 : vector<8x32xf32>
    %212 = arith.mulf %204, %211 : vector<8x32xf32>
    %213 = arith.addf %210, %212 : vector<8x32xf32>
    %c8 = arith.constant 8 : index
    %c0_60 = arith.constant 0 : index
    %c0_61 = arith.constant 0 : index
    %214 = vector.load %arg12[%c8, %c0_60, %c0_61] : memref<24x8x96xf32, #tpu.memory_space<vmem>>, vector<1x8x96xf32>
    %215 = vector.shape_cast %214 : vector<1x8x96xf32> to vector<8x96xf32>
    %cst_62 = arith.constant dense<0.000000e+00> : vector<8x96xf32>
    %216 = tpu.matmul %213, %33, %cst_62 {dimension_numbers = #tpu.dot_dimension_numbers<[1], [0], [0], [1], [0, 0, 1, 1], [], []>} : vector<8x32xf32>, vector<32x96xf32>, vector<8x96xf32> -> vector<8x96xf32>
    %217 = vector.extract_strided_slice %215 {offsets = [0, 0], sizes = [8, 64], strides = [1, 1]} : vector<8x96xf32> to vector<8x64xf32>
    %218 = vector.extract_strided_slice %216 {offsets = [0, 0], sizes = [8, 64], strides = [1, 1]} : vector<8x96xf32> to vector<8x64xf32>
    %219 = arith.addf %217, %218 : vector<8x64xf32>
    %220 = arith.negf %219 : vector<8x64xf32>
    %221 = math.exp %220 : vector<8x64xf32>
    %cst_63 = arith.constant 1.000000e+00 : f32
    %222 = vector.broadcast %cst_63 : f32 to vector<8x64xf32>
    %223 = arith.addf %222, %221 : vector<8x64xf32>
    %224 = arith.divf %222, %223 : vector<8x64xf32>
    %225 = vector.extract_strided_slice %224 {offsets = [0, 0], sizes = [8, 32], strides = [1, 1]} : vector<8x64xf32> to vector<8x32xf32>
    %226 = vector.extract_strided_slice %224 {offsets = [0, 32], sizes = [8, 32], strides = [1, 1]} : vector<8x64xf32> to vector<8x32xf32>
    %227 = vector.extract_strided_slice %215 {offsets = [0, 64], sizes = [8, 32], strides = [1, 1]} : vector<8x96xf32> to vector<8x32xf32>
    %228 = vector.extract_strided_slice %216 {offsets = [0, 64], sizes = [8, 32], strides = [1, 1]} : vector<8x96xf32> to vector<8x32xf32>
    %229 = arith.addf %228, %36 : vector<8x32xf32>
    %230 = arith.mulf %225, %229 : vector<8x32xf32>
    %231 = arith.addf %227, %230 : vector<8x32xf32>
    %232 = math.tanh %231 : vector<8x32xf32>
    %233 = arith.subf %213, %232 : vector<8x32xf32>
    %234 = arith.mulf %226, %233 : vector<8x32xf32>
    %235 = arith.addf %232, %234 : vector<8x32xf32>
    %c9 = arith.constant 9 : index
    %c0_64 = arith.constant 0 : index
    %c0_65 = arith.constant 0 : index
    %236 = vector.load %arg12[%c9, %c0_64, %c0_65] : memref<24x8x96xf32, #tpu.memory_space<vmem>>, vector<1x8x96xf32>
    %237 = vector.shape_cast %236 : vector<1x8x96xf32> to vector<8x96xf32>
    %cst_66 = arith.constant dense<0.000000e+00> : vector<8x96xf32>
    %238 = tpu.matmul %235, %33, %cst_66 {dimension_numbers = #tpu.dot_dimension_numbers<[1], [0], [0], [1], [0, 0, 1, 1], [], []>} : vector<8x32xf32>, vector<32x96xf32>, vector<8x96xf32> -> vector<8x96xf32>
    %239 = vector.extract_strided_slice %237 {offsets = [0, 0], sizes = [8, 64], strides = [1, 1]} : vector<8x96xf32> to vector<8x64xf32>
    %240 = vector.extract_strided_slice %238 {offsets = [0, 0], sizes = [8, 64], strides = [1, 1]} : vector<8x96xf32> to vector<8x64xf32>
    %241 = arith.addf %239, %240 : vector<8x64xf32>
    %242 = arith.negf %241 : vector<8x64xf32>
    %243 = math.exp %242 : vector<8x64xf32>
    %cst_67 = arith.constant 1.000000e+00 : f32
    %244 = vector.broadcast %cst_67 : f32 to vector<8x64xf32>
    %245 = arith.addf %244, %243 : vector<8x64xf32>
    %246 = arith.divf %244, %245 : vector<8x64xf32>
    %247 = vector.extract_strided_slice %246 {offsets = [0, 0], sizes = [8, 32], strides = [1, 1]} : vector<8x64xf32> to vector<8x32xf32>
    %248 = vector.extract_strided_slice %246 {offsets = [0, 32], sizes = [8, 32], strides = [1, 1]} : vector<8x64xf32> to vector<8x32xf32>
    %249 = vector.extract_strided_slice %237 {offsets = [0, 64], sizes = [8, 32], strides = [1, 1]} : vector<8x96xf32> to vector<8x32xf32>
    %250 = vector.extract_strided_slice %238 {offsets = [0, 64], sizes = [8, 32], strides = [1, 1]} : vector<8x96xf32> to vector<8x32xf32>
    %251 = arith.addf %250, %36 : vector<8x32xf32>
    %252 = arith.mulf %247, %251 : vector<8x32xf32>
    %253 = arith.addf %249, %252 : vector<8x32xf32>
    %254 = math.tanh %253 : vector<8x32xf32>
    %255 = arith.subf %235, %254 : vector<8x32xf32>
    %256 = arith.mulf %248, %255 : vector<8x32xf32>
    %257 = arith.addf %254, %256 : vector<8x32xf32>
    %c10 = arith.constant 10 : index
    %c0_68 = arith.constant 0 : index
    %c0_69 = arith.constant 0 : index
    %258 = vector.load %arg12[%c10, %c0_68, %c0_69] : memref<24x8x96xf32, #tpu.memory_space<vmem>>, vector<1x8x96xf32>
    %259 = vector.shape_cast %258 : vector<1x8x96xf32> to vector<8x96xf32>
    %cst_70 = arith.constant dense<0.000000e+00> : vector<8x96xf32>
    %260 = tpu.matmul %257, %33, %cst_70 {dimension_numbers = #tpu.dot_dimension_numbers<[1], [0], [0], [1], [0, 0, 1, 1], [], []>} : vector<8x32xf32>, vector<32x96xf32>, vector<8x96xf32> -> vector<8x96xf32>
    %261 = vector.extract_strided_slice %259 {offsets = [0, 0], sizes = [8, 64], strides = [1, 1]} : vector<8x96xf32> to vector<8x64xf32>
    %262 = vector.extract_strided_slice %260 {offsets = [0, 0], sizes = [8, 64], strides = [1, 1]} : vector<8x96xf32> to vector<8x64xf32>
    %263 = arith.addf %261, %262 : vector<8x64xf32>
    %264 = arith.negf %263 : vector<8x64xf32>
    %265 = math.exp %264 : vector<8x64xf32>
    %cst_71 = arith.constant 1.000000e+00 : f32
    %266 = vector.broadcast %cst_71 : f32 to vector<8x64xf32>
    %267 = arith.addf %266, %265 : vector<8x64xf32>
    %268 = arith.divf %266, %267 : vector<8x64xf32>
    %269 = vector.extract_strided_slice %268 {offsets = [0, 0], sizes = [8, 32], strides = [1, 1]} : vector<8x64xf32> to vector<8x32xf32>
    %270 = vector.extract_strided_slice %268 {offsets = [0, 32], sizes = [8, 32], strides = [1, 1]} : vector<8x64xf32> to vector<8x32xf32>
    %271 = vector.extract_strided_slice %259 {offsets = [0, 64], sizes = [8, 32], strides = [1, 1]} : vector<8x96xf32> to vector<8x32xf32>
    %272 = vector.extract_strided_slice %260 {offsets = [0, 64], sizes = [8, 32], strides = [1, 1]} : vector<8x96xf32> to vector<8x32xf32>
    %273 = arith.addf %272, %36 : vector<8x32xf32>
    %274 = arith.mulf %269, %273 : vector<8x32xf32>
    %275 = arith.addf %271, %274 : vector<8x32xf32>
    %276 = math.tanh %275 : vector<8x32xf32>
    %277 = arith.subf %257, %276 : vector<8x32xf32>
    %278 = arith.mulf %270, %277 : vector<8x32xf32>
    %279 = arith.addf %276, %278 : vector<8x32xf32>
    %c11 = arith.constant 11 : index
    %c0_72 = arith.constant 0 : index
    %c0_73 = arith.constant 0 : index
    %280 = vector.load %arg12[%c11, %c0_72, %c0_73] : memref<24x8x96xf32, #tpu.memory_space<vmem>>, vector<1x8x96xf32>
    %281 = vector.shape_cast %280 : vector<1x8x96xf32> to vector<8x96xf32>
    %cst_74 = arith.constant dense<0.000000e+00> : vector<8x96xf32>
    %282 = tpu.matmul %279, %33, %cst_74 {dimension_numbers = #tpu.dot_dimension_numbers<[1], [0], [0], [1], [0, 0, 1, 1], [], []>} : vector<8x32xf32>, vector<32x96xf32>, vector<8x96xf32> -> vector<8x96xf32>
    %283 = vector.extract_strided_slice %281 {offsets = [0, 0], sizes = [8, 64], strides = [1, 1]} : vector<8x96xf32> to vector<8x64xf32>
    %284 = vector.extract_strided_slice %282 {offsets = [0, 0], sizes = [8, 64], strides = [1, 1]} : vector<8x96xf32> to vector<8x64xf32>
    %285 = arith.addf %283, %284 : vector<8x64xf32>
    %286 = arith.negf %285 : vector<8x64xf32>
    %287 = math.exp %286 : vector<8x64xf32>
    %cst_75 = arith.constant 1.000000e+00 : f32
    %288 = vector.broadcast %cst_75 : f32 to vector<8x64xf32>
    %289 = arith.addf %288, %287 : vector<8x64xf32>
    %290 = arith.divf %288, %289 : vector<8x64xf32>
    %291 = vector.extract_strided_slice %290 {offsets = [0, 0], sizes = [8, 32], strides = [1, 1]} : vector<8x64xf32> to vector<8x32xf32>
    %292 = vector.extract_strided_slice %290 {offsets = [0, 32], sizes = [8, 32], strides = [1, 1]} : vector<8x64xf32> to vector<8x32xf32>
    %293 = vector.extract_strided_slice %281 {offsets = [0, 64], sizes = [8, 32], strides = [1, 1]} : vector<8x96xf32> to vector<8x32xf32>
    %294 = vector.extract_strided_slice %282 {offsets = [0, 64], sizes = [8, 32], strides = [1, 1]} : vector<8x96xf32> to vector<8x32xf32>
    %295 = arith.addf %294, %36 : vector<8x32xf32>
    %296 = arith.mulf %291, %295 : vector<8x32xf32>
    %297 = arith.addf %293, %296 : vector<8x32xf32>
    %298 = math.tanh %297 : vector<8x32xf32>
    %299 = arith.subf %279, %298 : vector<8x32xf32>
    %300 = arith.mulf %292, %299 : vector<8x32xf32>
    %301 = arith.addf %298, %300 : vector<8x32xf32>
    %c12 = arith.constant 12 : index
    %c0_76 = arith.constant 0 : index
    %c0_77 = arith.constant 0 : index
    %302 = vector.load %arg12[%c12, %c0_76, %c0_77] : memref<24x8x96xf32, #tpu.memory_space<vmem>>, vector<1x8x96xf32>
    %303 = vector.shape_cast %302 : vector<1x8x96xf32> to vector<8x96xf32>
    %cst_78 = arith.constant dense<0.000000e+00> : vector<8x96xf32>
    %304 = tpu.matmul %301, %33, %cst_78 {dimension_numbers = #tpu.dot_dimension_numbers<[1], [0], [0], [1], [0, 0, 1, 1], [], []>} : vector<8x32xf32>, vector<32x96xf32>, vector<8x96xf32> -> vector<8x96xf32>
    %305 = vector.extract_strided_slice %303 {offsets = [0, 0], sizes = [8, 64], strides = [1, 1]} : vector<8x96xf32> to vector<8x64xf32>
    %306 = vector.extract_strided_slice %304 {offsets = [0, 0], sizes = [8, 64], strides = [1, 1]} : vector<8x96xf32> to vector<8x64xf32>
    %307 = arith.addf %305, %306 : vector<8x64xf32>
    %308 = arith.negf %307 : vector<8x64xf32>
    %309 = math.exp %308 : vector<8x64xf32>
    %cst_79 = arith.constant 1.000000e+00 : f32
    %310 = vector.broadcast %cst_79 : f32 to vector<8x64xf32>
    %311 = arith.addf %310, %309 : vector<8x64xf32>
    %312 = arith.divf %310, %311 : vector<8x64xf32>
    %313 = vector.extract_strided_slice %312 {offsets = [0, 0], sizes = [8, 32], strides = [1, 1]} : vector<8x64xf32> to vector<8x32xf32>
    %314 = vector.extract_strided_slice %312 {offsets = [0, 32], sizes = [8, 32], strides = [1, 1]} : vector<8x64xf32> to vector<8x32xf32>
    %315 = vector.extract_strided_slice %303 {offsets = [0, 64], sizes = [8, 32], strides = [1, 1]} : vector<8x96xf32> to vector<8x32xf32>
    %316 = vector.extract_strided_slice %304 {offsets = [0, 64], sizes = [8, 32], strides = [1, 1]} : vector<8x96xf32> to vector<8x32xf32>
    %317 = arith.addf %316, %36 : vector<8x32xf32>
    %318 = arith.mulf %313, %317 : vector<8x32xf32>
    %319 = arith.addf %315, %318 : vector<8x32xf32>
    %320 = math.tanh %319 : vector<8x32xf32>
    %321 = arith.subf %301, %320 : vector<8x32xf32>
    %322 = arith.mulf %314, %321 : vector<8x32xf32>
    %323 = arith.addf %320, %322 : vector<8x32xf32>
    %c13 = arith.constant 13 : index
    %c0_80 = arith.constant 0 : index
    %c0_81 = arith.constant 0 : index
    %324 = vector.load %arg12[%c13, %c0_80, %c0_81] : memref<24x8x96xf32, #tpu.memory_space<vmem>>, vector<1x8x96xf32>
    %325 = vector.shape_cast %324 : vector<1x8x96xf32> to vector<8x96xf32>
    %cst_82 = arith.constant dense<0.000000e+00> : vector<8x96xf32>
    %326 = tpu.matmul %323, %33, %cst_82 {dimension_numbers = #tpu.dot_dimension_numbers<[1], [0], [0], [1], [0, 0, 1, 1], [], []>} : vector<8x32xf32>, vector<32x96xf32>, vector<8x96xf32> -> vector<8x96xf32>
    %327 = vector.extract_strided_slice %325 {offsets = [0, 0], sizes = [8, 64], strides = [1, 1]} : vector<8x96xf32> to vector<8x64xf32>
    %328 = vector.extract_strided_slice %326 {offsets = [0, 0], sizes = [8, 64], strides = [1, 1]} : vector<8x96xf32> to vector<8x64xf32>
    %329 = arith.addf %327, %328 : vector<8x64xf32>
    %330 = arith.negf %329 : vector<8x64xf32>
    %331 = math.exp %330 : vector<8x64xf32>
    %cst_83 = arith.constant 1.000000e+00 : f32
    %332 = vector.broadcast %cst_83 : f32 to vector<8x64xf32>
    %333 = arith.addf %332, %331 : vector<8x64xf32>
    %334 = arith.divf %332, %333 : vector<8x64xf32>
    %335 = vector.extract_strided_slice %334 {offsets = [0, 0], sizes = [8, 32], strides = [1, 1]} : vector<8x64xf32> to vector<8x32xf32>
    %336 = vector.extract_strided_slice %334 {offsets = [0, 32], sizes = [8, 32], strides = [1, 1]} : vector<8x64xf32> to vector<8x32xf32>
    %337 = vector.extract_strided_slice %325 {offsets = [0, 64], sizes = [8, 32], strides = [1, 1]} : vector<8x96xf32> to vector<8x32xf32>
    %338 = vector.extract_strided_slice %326 {offsets = [0, 64], sizes = [8, 32], strides = [1, 1]} : vector<8x96xf32> to vector<8x32xf32>
    %339 = arith.addf %338, %36 : vector<8x32xf32>
    %340 = arith.mulf %335, %339 : vector<8x32xf32>
    %341 = arith.addf %337, %340 : vector<8x32xf32>
    %342 = math.tanh %341 : vector<8x32xf32>
    %343 = arith.subf %323, %342 : vector<8x32xf32>
    %344 = arith.mulf %336, %343 : vector<8x32xf32>
    %345 = arith.addf %342, %344 : vector<8x32xf32>
    %c14 = arith.constant 14 : index
    %c0_84 = arith.constant 0 : index
    %c0_85 = arith.constant 0 : index
    %346 = vector.load %arg12[%c14, %c0_84, %c0_85] : memref<24x8x96xf32, #tpu.memory_space<vmem>>, vector<1x8x96xf32>
    %347 = vector.shape_cast %346 : vector<1x8x96xf32> to vector<8x96xf32>
    %cst_86 = arith.constant dense<0.000000e+00> : vector<8x96xf32>
    %348 = tpu.matmul %345, %33, %cst_86 {dimension_numbers = #tpu.dot_dimension_numbers<[1], [0], [0], [1], [0, 0, 1, 1], [], []>} : vector<8x32xf32>, vector<32x96xf32>, vector<8x96xf32> -> vector<8x96xf32>
    %349 = vector.extract_strided_slice %347 {offsets = [0, 0], sizes = [8, 64], strides = [1, 1]} : vector<8x96xf32> to vector<8x64xf32>
    %350 = vector.extract_strided_slice %348 {offsets = [0, 0], sizes = [8, 64], strides = [1, 1]} : vector<8x96xf32> to vector<8x64xf32>
    %351 = arith.addf %349, %350 : vector<8x64xf32>
    %352 = arith.negf %351 : vector<8x64xf32>
    %353 = math.exp %352 : vector<8x64xf32>
    %cst_87 = arith.constant 1.000000e+00 : f32
    %354 = vector.broadcast %cst_87 : f32 to vector<8x64xf32>
    %355 = arith.addf %354, %353 : vector<8x64xf32>
    %356 = arith.divf %354, %355 : vector<8x64xf32>
    %357 = vector.extract_strided_slice %356 {offsets = [0, 0], sizes = [8, 32], strides = [1, 1]} : vector<8x64xf32> to vector<8x32xf32>
    %358 = vector.extract_strided_slice %356 {offsets = [0, 32], sizes = [8, 32], strides = [1, 1]} : vector<8x64xf32> to vector<8x32xf32>
    %359 = vector.extract_strided_slice %347 {offsets = [0, 64], sizes = [8, 32], strides = [1, 1]} : vector<8x96xf32> to vector<8x32xf32>
    %360 = vector.extract_strided_slice %348 {offsets = [0, 64], sizes = [8, 32], strides = [1, 1]} : vector<8x96xf32> to vector<8x32xf32>
    %361 = arith.addf %360, %36 : vector<8x32xf32>
    %362 = arith.mulf %357, %361 : vector<8x32xf32>
    %363 = arith.addf %359, %362 : vector<8x32xf32>
    %364 = math.tanh %363 : vector<8x32xf32>
    %365 = arith.subf %345, %364 : vector<8x32xf32>
    %366 = arith.mulf %358, %365 : vector<8x32xf32>
    %367 = arith.addf %364, %366 : vector<8x32xf32>
    %c15 = arith.constant 15 : index
    %c0_88 = arith.constant 0 : index
    %c0_89 = arith.constant 0 : index
    %368 = vector.load %arg12[%c15, %c0_88, %c0_89] : memref<24x8x96xf32, #tpu.memory_space<vmem>>, vector<1x8x96xf32>
    %369 = vector.shape_cast %368 : vector<1x8x96xf32> to vector<8x96xf32>
    %cst_90 = arith.constant dense<0.000000e+00> : vector<8x96xf32>
    %370 = tpu.matmul %367, %33, %cst_90 {dimension_numbers = #tpu.dot_dimension_numbers<[1], [0], [0], [1], [0, 0, 1, 1], [], []>} : vector<8x32xf32>, vector<32x96xf32>, vector<8x96xf32> -> vector<8x96xf32>
    %371 = vector.extract_strided_slice %369 {offsets = [0, 0], sizes = [8, 64], strides = [1, 1]} : vector<8x96xf32> to vector<8x64xf32>
    %372 = vector.extract_strided_slice %370 {offsets = [0, 0], sizes = [8, 64], strides = [1, 1]} : vector<8x96xf32> to vector<8x64xf32>
    %373 = arith.addf %371, %372 : vector<8x64xf32>
    %374 = arith.negf %373 : vector<8x64xf32>
    %375 = math.exp %374 : vector<8x64xf32>
    %cst_91 = arith.constant 1.000000e+00 : f32
    %376 = vector.broadcast %cst_91 : f32 to vector<8x64xf32>
    %377 = arith.addf %376, %375 : vector<8x64xf32>
    %378 = arith.divf %376, %377 : vector<8x64xf32>
    %379 = vector.extract_strided_slice %378 {offsets = [0, 0], sizes = [8, 32], strides = [1, 1]} : vector<8x64xf32> to vector<8x32xf32>
    %380 = vector.extract_strided_slice %378 {offsets = [0, 32], sizes = [8, 32], strides = [1, 1]} : vector<8x64xf32> to vector<8x32xf32>
    %381 = vector.extract_strided_slice %369 {offsets = [0, 64], sizes = [8, 32], strides = [1, 1]} : vector<8x96xf32> to vector<8x32xf32>
    %382 = vector.extract_strided_slice %370 {offsets = [0, 64], sizes = [8, 32], strides = [1, 1]} : vector<8x96xf32> to vector<8x32xf32>
    %383 = arith.addf %382, %36 : vector<8x32xf32>
    %384 = arith.mulf %379, %383 : vector<8x32xf32>
    %385 = arith.addf %381, %384 : vector<8x32xf32>
    %386 = math.tanh %385 : vector<8x32xf32>
    %387 = arith.subf %367, %386 : vector<8x32xf32>
    %388 = arith.mulf %380, %387 : vector<8x32xf32>
    %389 = arith.addf %386, %388 : vector<8x32xf32>
    %c16 = arith.constant 16 : index
    %c0_92 = arith.constant 0 : index
    %c0_93 = arith.constant 0 : index
    %390 = vector.load %arg12[%c16, %c0_92, %c0_93] : memref<24x8x96xf32, #tpu.memory_space<vmem>>, vector<1x8x96xf32>
    %391 = vector.shape_cast %390 : vector<1x8x96xf32> to vector<8x96xf32>
    %cst_94 = arith.constant dense<0.000000e+00> : vector<8x96xf32>
    %392 = tpu.matmul %389, %33, %cst_94 {dimension_numbers = #tpu.dot_dimension_numbers<[1], [0], [0], [1], [0, 0, 1, 1], [], []>} : vector<8x32xf32>, vector<32x96xf32>, vector<8x96xf32> -> vector<8x96xf32>
    %393 = vector.extract_strided_slice %391 {offsets = [0, 0], sizes = [8, 64], strides = [1, 1]} : vector<8x96xf32> to vector<8x64xf32>
    %394 = vector.extract_strided_slice %392 {offsets = [0, 0], sizes = [8, 64], strides = [1, 1]} : vector<8x96xf32> to vector<8x64xf32>
    %395 = arith.addf %393, %394 : vector<8x64xf32>
    %396 = arith.negf %395 : vector<8x64xf32>
    %397 = math.exp %396 : vector<8x64xf32>
    %cst_95 = arith.constant 1.000000e+00 : f32
    %398 = vector.broadcast %cst_95 : f32 to vector<8x64xf32>
    %399 = arith.addf %398, %397 : vector<8x64xf32>
    %400 = arith.divf %398, %399 : vector<8x64xf32>
    %401 = vector.extract_strided_slice %400 {offsets = [0, 0], sizes = [8, 32], strides = [1, 1]} : vector<8x64xf32> to vector<8x32xf32>
    %402 = vector.extract_strided_slice %400 {offsets = [0, 32], sizes = [8, 32], strides = [1, 1]} : vector<8x64xf32> to vector<8x32xf32>
    %403 = vector.extract_strided_slice %391 {offsets = [0, 64], sizes = [8, 32], strides = [1, 1]} : vector<8x96xf32> to vector<8x32xf32>
    %404 = vector.extract_strided_slice %392 {offsets = [0, 64], sizes = [8, 32], strides = [1, 1]} : vector<8x96xf32> to vector<8x32xf32>
    %405 = arith.addf %404, %36 : vector<8x32xf32>
    %406 = arith.mulf %401, %405 : vector<8x32xf32>
    %407 = arith.addf %403, %406 : vector<8x32xf32>
    %408 = math.tanh %407 : vector<8x32xf32>
    %409 = arith.subf %389, %408 : vector<8x32xf32>
    %410 = arith.mulf %402, %409 : vector<8x32xf32>
    %411 = arith.addf %408, %410 : vector<8x32xf32>
    %c17 = arith.constant 17 : index
    %c0_96 = arith.constant 0 : index
    %c0_97 = arith.constant 0 : index
    %412 = vector.load %arg12[%c17, %c0_96, %c0_97] : memref<24x8x96xf32, #tpu.memory_space<vmem>>, vector<1x8x96xf32>
    %413 = vector.shape_cast %412 : vector<1x8x96xf32> to vector<8x96xf32>
    %cst_98 = arith.constant dense<0.000000e+00> : vector<8x96xf32>
    %414 = tpu.matmul %411, %33, %cst_98 {dimension_numbers = #tpu.dot_dimension_numbers<[1], [0], [0], [1], [0, 0, 1, 1], [], []>} : vector<8x32xf32>, vector<32x96xf32>, vector<8x96xf32> -> vector<8x96xf32>
    %415 = vector.extract_strided_slice %413 {offsets = [0, 0], sizes = [8, 64], strides = [1, 1]} : vector<8x96xf32> to vector<8x64xf32>
    %416 = vector.extract_strided_slice %414 {offsets = [0, 0], sizes = [8, 64], strides = [1, 1]} : vector<8x96xf32> to vector<8x64xf32>
    %417 = arith.addf %415, %416 : vector<8x64xf32>
    %418 = arith.negf %417 : vector<8x64xf32>
    %419 = math.exp %418 : vector<8x64xf32>
    %cst_99 = arith.constant 1.000000e+00 : f32
    %420 = vector.broadcast %cst_99 : f32 to vector<8x64xf32>
    %421 = arith.addf %420, %419 : vector<8x64xf32>
    %422 = arith.divf %420, %421 : vector<8x64xf32>
    %423 = vector.extract_strided_slice %422 {offsets = [0, 0], sizes = [8, 32], strides = [1, 1]} : vector<8x64xf32> to vector<8x32xf32>
    %424 = vector.extract_strided_slice %422 {offsets = [0, 32], sizes = [8, 32], strides = [1, 1]} : vector<8x64xf32> to vector<8x32xf32>
    %425 = vector.extract_strided_slice %413 {offsets = [0, 64], sizes = [8, 32], strides = [1, 1]} : vector<8x96xf32> to vector<8x32xf32>
    %426 = vector.extract_strided_slice %414 {offsets = [0, 64], sizes = [8, 32], strides = [1, 1]} : vector<8x96xf32> to vector<8x32xf32>
    %427 = arith.addf %426, %36 : vector<8x32xf32>
    %428 = arith.mulf %423, %427 : vector<8x32xf32>
    %429 = arith.addf %425, %428 : vector<8x32xf32>
    %430 = math.tanh %429 : vector<8x32xf32>
    %431 = arith.subf %411, %430 : vector<8x32xf32>
    %432 = arith.mulf %424, %431 : vector<8x32xf32>
    %433 = arith.addf %430, %432 : vector<8x32xf32>
    %c18 = arith.constant 18 : index
    %c0_100 = arith.constant 0 : index
    %c0_101 = arith.constant 0 : index
    %434 = vector.load %arg12[%c18, %c0_100, %c0_101] : memref<24x8x96xf32, #tpu.memory_space<vmem>>, vector<1x8x96xf32>
    %435 = vector.shape_cast %434 : vector<1x8x96xf32> to vector<8x96xf32>
    %cst_102 = arith.constant dense<0.000000e+00> : vector<8x96xf32>
    %436 = tpu.matmul %433, %33, %cst_102 {dimension_numbers = #tpu.dot_dimension_numbers<[1], [0], [0], [1], [0, 0, 1, 1], [], []>} : vector<8x32xf32>, vector<32x96xf32>, vector<8x96xf32> -> vector<8x96xf32>
    %437 = vector.extract_strided_slice %435 {offsets = [0, 0], sizes = [8, 64], strides = [1, 1]} : vector<8x96xf32> to vector<8x64xf32>
    %438 = vector.extract_strided_slice %436 {offsets = [0, 0], sizes = [8, 64], strides = [1, 1]} : vector<8x96xf32> to vector<8x64xf32>
    %439 = arith.addf %437, %438 : vector<8x64xf32>
    %440 = arith.negf %439 : vector<8x64xf32>
    %441 = math.exp %440 : vector<8x64xf32>
    %cst_103 = arith.constant 1.000000e+00 : f32
    %442 = vector.broadcast %cst_103 : f32 to vector<8x64xf32>
    %443 = arith.addf %442, %441 : vector<8x64xf32>
    %444 = arith.divf %442, %443 : vector<8x64xf32>
    %445 = vector.extract_strided_slice %444 {offsets = [0, 0], sizes = [8, 32], strides = [1, 1]} : vector<8x64xf32> to vector<8x32xf32>
    %446 = vector.extract_strided_slice %444 {offsets = [0, 32], sizes = [8, 32], strides = [1, 1]} : vector<8x64xf32> to vector<8x32xf32>
    %447 = vector.extract_strided_slice %435 {offsets = [0, 64], sizes = [8, 32], strides = [1, 1]} : vector<8x96xf32> to vector<8x32xf32>
    %448 = vector.extract_strided_slice %436 {offsets = [0, 64], sizes = [8, 32], strides = [1, 1]} : vector<8x96xf32> to vector<8x32xf32>
    %449 = arith.addf %448, %36 : vector<8x32xf32>
    %450 = arith.mulf %445, %449 : vector<8x32xf32>
    %451 = arith.addf %447, %450 : vector<8x32xf32>
    %452 = math.tanh %451 : vector<8x32xf32>
    %453 = arith.subf %433, %452 : vector<8x32xf32>
    %454 = arith.mulf %446, %453 : vector<8x32xf32>
    %455 = arith.addf %452, %454 : vector<8x32xf32>
    %c19 = arith.constant 19 : index
    %c0_104 = arith.constant 0 : index
    %c0_105 = arith.constant 0 : index
    %456 = vector.load %arg12[%c19, %c0_104, %c0_105] : memref<24x8x96xf32, #tpu.memory_space<vmem>>, vector<1x8x96xf32>
    %457 = vector.shape_cast %456 : vector<1x8x96xf32> to vector<8x96xf32>
    %cst_106 = arith.constant dense<0.000000e+00> : vector<8x96xf32>
    %458 = tpu.matmul %455, %33, %cst_106 {dimension_numbers = #tpu.dot_dimension_numbers<[1], [0], [0], [1], [0, 0, 1, 1], [], []>} : vector<8x32xf32>, vector<32x96xf32>, vector<8x96xf32> -> vector<8x96xf32>
    %459 = vector.extract_strided_slice %457 {offsets = [0, 0], sizes = [8, 64], strides = [1, 1]} : vector<8x96xf32> to vector<8x64xf32>
    %460 = vector.extract_strided_slice %458 {offsets = [0, 0], sizes = [8, 64], strides = [1, 1]} : vector<8x96xf32> to vector<8x64xf32>
    %461 = arith.addf %459, %460 : vector<8x64xf32>
    %462 = arith.negf %461 : vector<8x64xf32>
    %463 = math.exp %462 : vector<8x64xf32>
    %cst_107 = arith.constant 1.000000e+00 : f32
    %464 = vector.broadcast %cst_107 : f32 to vector<8x64xf32>
    %465 = arith.addf %464, %463 : vector<8x64xf32>
    %466 = arith.divf %464, %465 : vector<8x64xf32>
    %467 = vector.extract_strided_slice %466 {offsets = [0, 0], sizes = [8, 32], strides = [1, 1]} : vector<8x64xf32> to vector<8x32xf32>
    %468 = vector.extract_strided_slice %466 {offsets = [0, 32], sizes = [8, 32], strides = [1, 1]} : vector<8x64xf32> to vector<8x32xf32>
    %469 = vector.extract_strided_slice %457 {offsets = [0, 64], sizes = [8, 32], strides = [1, 1]} : vector<8x96xf32> to vector<8x32xf32>
    %470 = vector.extract_strided_slice %458 {offsets = [0, 64], sizes = [8, 32], strides = [1, 1]} : vector<8x96xf32> to vector<8x32xf32>
    %471 = arith.addf %470, %36 : vector<8x32xf32>
    %472 = arith.mulf %467, %471 : vector<8x32xf32>
    %473 = arith.addf %469, %472 : vector<8x32xf32>
    %474 = math.tanh %473 : vector<8x32xf32>
    %475 = arith.subf %455, %474 : vector<8x32xf32>
    %476 = arith.mulf %468, %475 : vector<8x32xf32>
    %477 = arith.addf %474, %476 : vector<8x32xf32>
    %c20 = arith.constant 20 : index
    %c0_108 = arith.constant 0 : index
    %c0_109 = arith.constant 0 : index
    %478 = vector.load %arg12[%c20, %c0_108, %c0_109] : memref<24x8x96xf32, #tpu.memory_space<vmem>>, vector<1x8x96xf32>
    %479 = vector.shape_cast %478 : vector<1x8x96xf32> to vector<8x96xf32>
    %cst_110 = arith.constant dense<0.000000e+00> : vector<8x96xf32>
    %480 = tpu.matmul %477, %33, %cst_110 {dimension_numbers = #tpu.dot_dimension_numbers<[1], [0], [0], [1], [0, 0, 1, 1], [], []>} : vector<8x32xf32>, vector<32x96xf32>, vector<8x96xf32> -> vector<8x96xf32>
    %481 = vector.extract_strided_slice %479 {offsets = [0, 0], sizes = [8, 64], strides = [1, 1]} : vector<8x96xf32> to vector<8x64xf32>
    %482 = vector.extract_strided_slice %480 {offsets = [0, 0], sizes = [8, 64], strides = [1, 1]} : vector<8x96xf32> to vector<8x64xf32>
    %483 = arith.addf %481, %482 : vector<8x64xf32>
    %484 = arith.negf %483 : vector<8x64xf32>
    %485 = math.exp %484 : vector<8x64xf32>
    %cst_111 = arith.constant 1.000000e+00 : f32
    %486 = vector.broadcast %cst_111 : f32 to vector<8x64xf32>
    %487 = arith.addf %486, %485 : vector<8x64xf32>
    %488 = arith.divf %486, %487 : vector<8x64xf32>
    %489 = vector.extract_strided_slice %488 {offsets = [0, 0], sizes = [8, 32], strides = [1, 1]} : vector<8x64xf32> to vector<8x32xf32>
    %490 = vector.extract_strided_slice %488 {offsets = [0, 32], sizes = [8, 32], strides = [1, 1]} : vector<8x64xf32> to vector<8x32xf32>
    %491 = vector.extract_strided_slice %479 {offsets = [0, 64], sizes = [8, 32], strides = [1, 1]} : vector<8x96xf32> to vector<8x32xf32>
    %492 = vector.extract_strided_slice %480 {offsets = [0, 64], sizes = [8, 32], strides = [1, 1]} : vector<8x96xf32> to vector<8x32xf32>
    %493 = arith.addf %492, %36 : vector<8x32xf32>
    %494 = arith.mulf %489, %493 : vector<8x32xf32>
    %495 = arith.addf %491, %494 : vector<8x32xf32>
    %496 = math.tanh %495 : vector<8x32xf32>
    %497 = arith.subf %477, %496 : vector<8x32xf32>
    %498 = arith.mulf %490, %497 : vector<8x32xf32>
    %499 = arith.addf %496, %498 : vector<8x32xf32>
    %c21 = arith.constant 21 : index
    %c0_112 = arith.constant 0 : index
    %c0_113 = arith.constant 0 : index
    %500 = vector.load %arg12[%c21, %c0_112, %c0_113] : memref<24x8x96xf32, #tpu.memory_space<vmem>>, vector<1x8x96xf32>
    %501 = vector.shape_cast %500 : vector<1x8x96xf32> to vector<8x96xf32>
    %cst_114 = arith.constant dense<0.000000e+00> : vector<8x96xf32>
    %502 = tpu.matmul %499, %33, %cst_114 {dimension_numbers = #tpu.dot_dimension_numbers<[1], [0], [0], [1], [0, 0, 1, 1], [], []>} : vector<8x32xf32>, vector<32x96xf32>, vector<8x96xf32> -> vector<8x96xf32>
    %503 = vector.extract_strided_slice %501 {offsets = [0, 0], sizes = [8, 64], strides = [1, 1]} : vector<8x96xf32> to vector<8x64xf32>
    %504 = vector.extract_strided_slice %502 {offsets = [0, 0], sizes = [8, 64], strides = [1, 1]} : vector<8x96xf32> to vector<8x64xf32>
    %505 = arith.addf %503, %504 : vector<8x64xf32>
    %506 = arith.negf %505 : vector<8x64xf32>
    %507 = math.exp %506 : vector<8x64xf32>
    %cst_115 = arith.constant 1.000000e+00 : f32
    %508 = vector.broadcast %cst_115 : f32 to vector<8x64xf32>
    %509 = arith.addf %508, %507 : vector<8x64xf32>
    %510 = arith.divf %508, %509 : vector<8x64xf32>
    %511 = vector.extract_strided_slice %510 {offsets = [0, 0], sizes = [8, 32], strides = [1, 1]} : vector<8x64xf32> to vector<8x32xf32>
    %512 = vector.extract_strided_slice %510 {offsets = [0, 32], sizes = [8, 32], strides = [1, 1]} : vector<8x64xf32> to vector<8x32xf32>
    %513 = vector.extract_strided_slice %501 {offsets = [0, 64], sizes = [8, 32], strides = [1, 1]} : vector<8x96xf32> to vector<8x32xf32>
    %514 = vector.extract_strided_slice %502 {offsets = [0, 64], sizes = [8, 32], strides = [1, 1]} : vector<8x96xf32> to vector<8x32xf32>
    %515 = arith.addf %514, %36 : vector<8x32xf32>
    %516 = arith.mulf %511, %515 : vector<8x32xf32>
    %517 = arith.addf %513, %516 : vector<8x32xf32>
    %518 = math.tanh %517 : vector<8x32xf32>
    %519 = arith.subf %499, %518 : vector<8x32xf32>
    %520 = arith.mulf %512, %519 : vector<8x32xf32>
    %521 = arith.addf %518, %520 : vector<8x32xf32>
    %c22 = arith.constant 22 : index
    %c0_116 = arith.constant 0 : index
    %c0_117 = arith.constant 0 : index
    %522 = vector.load %arg12[%c22, %c0_116, %c0_117] : memref<24x8x96xf32, #tpu.memory_space<vmem>>, vector<1x8x96xf32>
    %523 = vector.shape_cast %522 : vector<1x8x96xf32> to vector<8x96xf32>
    %cst_118 = arith.constant dense<0.000000e+00> : vector<8x96xf32>
    %524 = tpu.matmul %521, %33, %cst_118 {dimension_numbers = #tpu.dot_dimension_numbers<[1], [0], [0], [1], [0, 0, 1, 1], [], []>} : vector<8x32xf32>, vector<32x96xf32>, vector<8x96xf32> -> vector<8x96xf32>
    %525 = vector.extract_strided_slice %523 {offsets = [0, 0], sizes = [8, 64], strides = [1, 1]} : vector<8x96xf32> to vector<8x64xf32>
    %526 = vector.extract_strided_slice %524 {offsets = [0, 0], sizes = [8, 64], strides = [1, 1]} : vector<8x96xf32> to vector<8x64xf32>
    %527 = arith.addf %525, %526 : vector<8x64xf32>
    %528 = arith.negf %527 : vector<8x64xf32>
    %529 = math.exp %528 : vector<8x64xf32>
    %cst_119 = arith.constant 1.000000e+00 : f32
    %530 = vector.broadcast %cst_119 : f32 to vector<8x64xf32>
    %531 = arith.addf %530, %529 : vector<8x64xf32>
    %532 = arith.divf %530, %531 : vector<8x64xf32>
    %533 = vector.extract_strided_slice %532 {offsets = [0, 0], sizes = [8, 32], strides = [1, 1]} : vector<8x64xf32> to vector<8x32xf32>
    %534 = vector.extract_strided_slice %532 {offsets = [0, 32], sizes = [8, 32], strides = [1, 1]} : vector<8x64xf32> to vector<8x32xf32>
    %535 = vector.extract_strided_slice %523 {offsets = [0, 64], sizes = [8, 32], strides = [1, 1]} : vector<8x96xf32> to vector<8x32xf32>
    %536 = vector.extract_strided_slice %524 {offsets = [0, 64], sizes = [8, 32], strides = [1, 1]} : vector<8x96xf32> to vector<8x32xf32>
    %537 = arith.addf %536, %36 : vector<8x32xf32>
    %538 = arith.mulf %533, %537 : vector<8x32xf32>
    %539 = arith.addf %535, %538 : vector<8x32xf32>
    %540 = math.tanh %539 : vector<8x32xf32>
    %541 = arith.subf %521, %540 : vector<8x32xf32>
    %542 = arith.mulf %534, %541 : vector<8x32xf32>
    %543 = arith.addf %540, %542 : vector<8x32xf32>
    %c23 = arith.constant 23 : index
    %c0_120 = arith.constant 0 : index
    %c0_121 = arith.constant 0 : index
    %544 = vector.load %arg12[%c23, %c0_120, %c0_121] : memref<24x8x96xf32, #tpu.memory_space<vmem>>, vector<1x8x96xf32>
    %545 = vector.shape_cast %544 : vector<1x8x96xf32> to vector<8x96xf32>
    %cst_122 = arith.constant dense<0.000000e+00> : vector<8x96xf32>
    %546 = tpu.matmul %543, %33, %cst_122 {dimension_numbers = #tpu.dot_dimension_numbers<[1], [0], [0], [1], [0, 0, 1, 1], [], []>} : vector<8x32xf32>, vector<32x96xf32>, vector<8x96xf32> -> vector<8x96xf32>
    %547 = vector.extract_strided_slice %545 {offsets = [0, 0], sizes = [8, 64], strides = [1, 1]} : vector<8x96xf32> to vector<8x64xf32>
    %548 = vector.extract_strided_slice %546 {offsets = [0, 0], sizes = [8, 64], strides = [1, 1]} : vector<8x96xf32> to vector<8x64xf32>
    %549 = arith.addf %547, %548 : vector<8x64xf32>
    %550 = arith.negf %549 : vector<8x64xf32>
    %551 = math.exp %550 : vector<8x64xf32>
    %cst_123 = arith.constant 1.000000e+00 : f32
    %552 = vector.broadcast %cst_123 : f32 to vector<8x64xf32>
    %553 = arith.addf %552, %551 : vector<8x64xf32>
    %554 = arith.divf %552, %553 : vector<8x64xf32>
    %555 = vector.extract_strided_slice %554 {offsets = [0, 0], sizes = [8, 32], strides = [1, 1]} : vector<8x64xf32> to vector<8x32xf32>
    %556 = vector.extract_strided_slice %554 {offsets = [0, 32], sizes = [8, 32], strides = [1, 1]} : vector<8x64xf32> to vector<8x32xf32>
    %557 = vector.extract_strided_slice %545 {offsets = [0, 64], sizes = [8, 32], strides = [1, 1]} : vector<8x96xf32> to vector<8x32xf32>
    %558 = vector.extract_strided_slice %546 {offsets = [0, 64], sizes = [8, 32], strides = [1, 1]} : vector<8x96xf32> to vector<8x32xf32>
    %559 = arith.addf %558, %36 : vector<8x32xf32>
    %560 = arith.mulf %555, %559 : vector<8x32xf32>
    %561 = arith.addf %557, %560 : vector<8x32xf32>
    %562 = math.tanh %561 : vector<8x32xf32>
    %563 = arith.subf %543, %562 : vector<8x32xf32>
    %564 = arith.mulf %556, %563 : vector<8x32xf32>
    %565 = arith.addf %562, %564 : vector<8x32xf32>
    %c0_124 = arith.constant 0 : index
    %c0_125 = arith.constant 0 : index
    %566 = vector.load %arg11[%c0_124, %c0_125] : memref<8x32xf32, #tpu.memory_space<vmem>>, vector<8x32xf32>
    tpu.vector_store %arg11[%c0_124, %c0_125], %565 {strides = array<i32>} : memref<8x32xf32, #tpu.memory_space<vmem>>, vector<8x32xf32>,
    return
  }
  func.func @transform_0(%arg0: i32) -> (i32, i32) {
    %c0_i32 = arith.constant 0 : i32
    %c0_i32_0 = arith.constant 0 : i32
    return %c0_i32, %arg0 : i32, i32
  }
  func.func @transform_1(%arg0: i32) -> (i32, i32) {
    %c0_i32 = arith.constant 0 : i32
    %c0_i32_0 = arith.constant 0 : i32
    %c0_i32_1 = arith.constant 0 : i32
    return %c0_i32, %c0_i32_0 : i32, i32
  }
  func.func @transform_2(%arg0: i32) -> (i32, i32) {
    %c0_i32 = arith.constant 0 : i32
    %c0_i32_0 = arith.constant 0 : i32
    %c0_i32_1 = arith.constant 0 : i32
    return %c0_i32, %c0_i32_0 : i32, i32
  }
  func.func @transform_3(%arg0: i32) -> (i32, i32) {
    %c0_i32 = arith.constant 0 : i32
    %c0_i32_0 = arith.constant 0 : i32
    %c0_i32_1 = arith.constant 0 : i32
    return %c0_i32, %c0_i32_0 : i32, i32
  }
  func.func @transform_4(%arg0: i32) -> (i32, i32) {
    %c0_i32 = arith.constant 0 : i32
    %c0_i32_0 = arith.constant 0 : i32
    %c0_i32_1 = arith.constant 0 : i32
    return %c0_i32, %c0_i32_0 : i32, i32
  }
  func.func @transform_5(%arg0: i32) -> (i32, i32) {
    %c0_i32 = arith.constant 0 : i32
    %c0_i32_0 = arith.constant 0 : i32
    %c0_i32_1 = arith.constant 0 : i32
    return %c0_i32, %c0_i32_0 : i32, i32
  }
  func.func @transform_6(%arg0: i32) -> (i32, i32) {
    %c0_i32 = arith.constant 0 : i32
    %c0_i32_0 = arith.constant 0 : i32
    %c0_i32_1 = arith.constant 0 : i32
    return %c0_i32, %c0_i32_0 : i32, i32
  }
  func.func @transform_7(%arg0: i32) -> (i32, i32) {
    %c0_i32 = arith.constant 0 : i32
    %c0_i32_0 = arith.constant 0 : i32
    %c0_i32_1 = arith.constant 0 : i32
    return %c0_i32, %c0_i32_0 : i32, i32
  }
  func.func @transform_8(%arg0: i32) -> (i32, i32) {
    %c0_i32 = arith.constant 0 : i32
    %c0_i32_0 = arith.constant 0 : i32
    %c0_i32_1 = arith.constant 0 : i32
    return %c0_i32, %c0_i32_0 : i32, i32
  }
  func.func @transform_9(%arg0: i32) -> (i32, i32) {
    %c0_i32 = arith.constant 0 : i32
    %c0_i32_0 = arith.constant 0 : i32
    %c0_i32_1 = arith.constant 0 : i32
    return %c0_i32, %c0_i32_0 : i32, i32
  }
  func.func @transform_10(%arg0: i32) -> (i32, i32) {
    %c0_i32 = arith.constant 0 : i32
    %c0_i32_0 = arith.constant 0 : i32
    return %arg0, %c0_i32 : i32, i32
  }
}

</mosaic_0001>

<llo_original>
// kernel: tpu_custom_call.1
$region0: #{tpu_custom_call.1}
  #allocation0 [shape = 'u32[]', space=smem, size = 0x4, offset = 0x4, fixed_abs, tag = 'smem constant byte address 0x4 - core index']
  #allocation1 [shape = 'u32[72,128]{1,0:T(1,128)}', space=vmem, size = 0x9000, scoped, tag = 'internal scratch']
  #allocation2 [shape = 'f32[24,8,96]{2,1,0:T(8,128)}', space=vmem, size = 0x18000, scoped, tag = 'scratch operand']
  %s0 = inlined_call_operand.vmem [shape: f32[24,8], index: 0, kind: input, shape index: {}]
  %s1 = inlined_call_operand.vmem [shape: f32[2,16], index: 1, kind: input, shape index: {}]
  %s2 = inlined_call_operand.hbm [shape: f32[16,32], index: 2, kind: input, shape index: {}]
  %s3 = inlined_call_operand.vmem [shape: f32[1,32], index: 3, kind: input, shape index: {}]
  %s4 = inlined_call_operand.vmem [shape: f32[32,32], index: 4, kind: input, shape index: {}]
  %s5 = inlined_call_operand.vmem [shape: f32[1,32], index: 5, kind: input, shape index: {}]
  %s6 = inlined_call_operand.hbm [shape: f32[32,96], index: 6, kind: input, shape index: {}]
  %s7 = inlined_call_operand.vmem [shape: f32[1,96], index: 7, kind: input, shape index: {}]
  %s8 = inlined_call_operand.hbm [shape: f32[32,96], index: 8, kind: input, shape index: {}]
  %s9 = inlined_call_operand.vmem [shape: f32[1,32], index: 9, kind: input, shape index: {}]
  %s10 = inlined_call_operand.hbm [shape: f32[8,32], index: 10, kind: output, shape index: {}]
  %s11 = sld [smem:[#allocation0]]
  $region62: #{tpu_custom_call.1} parent=0
    _
  %s13 = ssub.s32 1, %s11
  %s14 = scalar_select 0, %s13, %s11
  $region1: #{tpu_custom_call.1} parent=0
    #allocation3 [shape = 'u8[8192]{0}', space=vmem, size = 0x2000, scoped, tag = 'input window, operand 2, single buffered']
    #allocation4 [shape = 's32[1]{0}', space=sflag, size = 0x4, scoped, tag = 'scoped memory for tpu_custom_call.1']
    #allocation5 [shape = 's32[1]{0}', space=sflag, size = 0x4, scoped, tag = 'scoped memory for tpu_custom_call.1']
    #allocation6 [shape = 'u8[16384]{0}', space=vmem, size = 0x4000, scoped, tag = 'input window, operand 6, single buffered']
    #allocation7 [shape = 's32[1]{0}', space=sflag, size = 0x4, scoped, tag = 'scoped memory for tpu_custom_call.1']
    #allocation8 [shape = 'u8[16384]{0}', space=vmem, size = 0x4000, scoped, tag = 'input window, operand 8, single buffered']
    #allocation9 [shape = 'u8[4096]{0}', space=vmem, size = 0x1000, scoped, tag = 'output window, operand 0, single buffered']
    %15 = vsyncpa [#allocation4], 0
    %16 = vsyncpa [#allocation7], 0
    %17 = vsyncpa [#allocation5], 0
    // Predicated region
    $region2: #{tpu_custom_call.1} parent=1 // pred_check
      _
    $region3: #{tpu_custom_call.1} parent=1 // pred_check_branch
      %19 = sbr.rel (0) target = $region5
    $region4: #{tpu_custom_call.1} parent=1 // pred_region
      _
    $region5: #{tpu_custom_call.1} parent=1 // pred_fallthru
      _
    // Predicated region
    $region6: #{tpu_custom_call.1} parent=1 // pred_check
      _
    $region7: #{tpu_custom_call.1} parent=1 // pred_check_branch
      %21 = sbr.rel (0) target = $region9
    $region8: #{tpu_custom_call.1} parent=1 // pred_region
      _
    $region9: #{tpu_custom_call.1} parent=1 // pred_fallthru
      _
    // Predicated region
    $region10: #{tpu_custom_call.1} parent=1 // pred_check
      _
    $region11: #{tpu_custom_call.1} parent=1 // pred_check_branch
      %23 = sbr.rel (0) target = $region13
    $region12: #{tpu_custom_call.1} parent=1 // pred_region
      %25 = vsyncadd [#allocation4], 0
      %s26 = sshll.u32 %s2, 4
      %s27 = int_to_ptr.hbm [resolvable:$true] %s26
      %s28 = sshll.u32 [#allocation3], 4
      %s29 = int_to_ptr.vmem [resolvable:$true] %s28
      %34 = dma.hbm_to_vmem [thread:$0]  %s27, 256, %s29, [#allocation4], 128, 128, 8
    $region13: #{tpu_custom_call.1} parent=1 // pred_fallthru
      _
    // Predicated region
    $region14: #{tpu_custom_call.1} parent=1 // pred_check
      _
    $region15: #{tpu_custom_call.1} parent=1 // pred_check_branch
      %36 = sbr.rel (0) target = $region17
    $region16: #{tpu_custom_call.1} parent=1 // pred_region
      _
    $region17: #{tpu_custom_call.1} parent=1 // pred_fallthru
      _
    // Predicated region
    $region18: #{tpu_custom_call.1} parent=1 // pred_check
      _
    $region19: #{tpu_custom_call.1} parent=1 // pred_check_branch
      %38 = sbr.rel (0) target = $region21
    $region20: #{tpu_custom_call.1} parent=1 // pred_region
      _
    $region21: #{tpu_custom_call.1} parent=1 // pred_fallthru
      _
    // Predicated region
    $region22: #{tpu_custom_call.1} parent=1 // pred_check
      _
    $region23: #{tpu_custom_call.1} parent=1 // pred_check_branch
      %40 = sbr.rel (0) target = $region25
    $region24: #{tpu_custom_call.1} parent=1 // pred_region
      _
    $region25: #{tpu_custom_call.1} parent=1 // pred_fallthru
      _
    // Predicated region
    $region26: #{tpu_custom_call.1} parent=1 // pred_check
      _
    $region27: #{tpu_custom_call.1} parent=1 // pred_check_branch
      %42 = sbr.rel (0) target = $region29
    $region28: #{tpu_custom_call.1} parent=1 // pred_region
      %44 = vsyncadd [#allocation7], 0
      %s45 = sshll.u32 %s6, 4
      %s46 = int_to_ptr.hbm [resolvable:$true] %s45
      %s47 = sshll.u32 [#allocation6], 4
      %s48 = int_to_ptr.vmem [resolvable:$true] %s47
      %53 = dma.hbm_to_vmem [thread:$0]  %s46, 512, %s48, [#allocation7], 128, 128, 8
    $region29: #{tpu_custom_call.1} parent=1 // pred_fallthru
      _
    // Predicated region
    $region30: #{tpu_custom_call.1} parent=1 // pred_check
      _
    $region31: #{tpu_custom_call.1} parent=1 // pred_check_branch
      %55 = sbr.rel (0) target = $region33
    $region32: #{tpu_custom_call.1} parent=1 // pred_region
      _
    $region33: #{tpu_custom_call.1} parent=1 // pred_fallthru
      _
    // Predicated region
    $region34: #{tpu_custom_call.1} parent=1 // pred_check
      _
    $region35: #{tpu_custom_call.1} parent=1 // pred_check_branch
      %57 = sbr.rel (0) target = $region37
    $region36: #{tpu_custom_call.1} parent=1 // pred_region
      %59 = vsyncadd [#allocation7], 0
      %s60 = sshll.u32 %s8, 4
      %s61 = int_to_ptr.hbm [resolvable:$true] %s60
      %s62 = sshll.u32 [#allocation8], 4
      %s63 = int_to_ptr.vmem [resolvable:$true] %s62
      %68 = dma.hbm_to_vmem [thread:$0]  %s61, 512, %s63, [#allocation7], 128, 128, 8
    $region37: #{tpu_custom_call.1} parent=1 // pred_fallthru
      _
    // Predicated region
    $region38: #{tpu_custom_call.1} parent=1 // pred_check
      _
    $region39: #{tpu_custom_call.1} parent=1 // pred_check_branch
      %70 = sbr.rel (0) target = $region41
    $region40: #{tpu_custom_call.1} parent=1 // pred_region
      _
    $region41: #{tpu_custom_call.1} parent=1 // pred_fallthru
      _
    // Predicated region
    $region42: #{tpu_custom_call.1} parent=1 // pred_check
      _
    $region43: #{tpu_custom_call.1} parent=1 // pred_check_branch
      %72 = sbr.rel (0) target = $region45
    $region44: #{tpu_custom_call.1} parent=1 // pred_region
      %74 = dma.done [#allocation4], 256
    $region45: #{tpu_custom_call.1} parent=1 // pred_fallthru
      _
    // Predicated region
    $region46: #{tpu_custom_call.1} parent=1 // pred_check
      _
    $region47: #{tpu_custom_call.1} parent=1 // pred_check_branch
      %76 = sbr.rel (0) target = $region49
    $region48: #{tpu_custom_call.1} parent=1 // pred_region
      %78 = dma.done [#allocation7], 512
    $region49: #{tpu_custom_call.1} parent=1 // pred_fallthru
      _
    // Predicated region
    $region50: #{tpu_custom_call.1} parent=1 // pred_check
      _
    $region51: #{tpu_custom_call.1} parent=1 // pred_check_branch
      %80 = sbr.rel (0) target = $region53
    $region52: #{tpu_custom_call.1} parent=1 // pred_region
      %82 = dma.done [#allocation7], 512
    $region53: #{tpu_custom_call.1} parent=1 // pred_fallthru
      _
    %v83 = vld [vmem:[%s1] sm:$0x3]
    %v84 = vld [vmem:[#allocation3] sm:$0xff]
    %v85 = vld [vmem:[#allocation3 + $0x8] sm:$0xff]
    %v86 = vld [vmem:[%s3] sm:$0x1]
    %v88 = vperm.slane %v86, 0
    %vm90 = vcmask 130048
    %v92 = vsel %vm90, %v83, 0
    %94 = vmatpush.msra.mxu0 0.0
    %95 = vmatpush.msra.mxu0 0.0
    %96 = vmatpush.msra.mxu0 0.0
    %97 = vmatpush.msra.mxu0 0.0
    %98 = vmatpush.msra.mxu0 0.0
    %99 = vmatpush.msra.mxu0 0.0
    %100 = vmatpush.msra.mxu0 0.0
    %101 = vmatpush.msra.mxu0 0.0
    %102 = vmatpush.msra.mxu0 0.0
    %103 = vmatpush.msra.mxu0 0.0
    %104 = vmatpush.msra.mxu0 0.0
    %105 = vmatpush.msra.mxu0 0.0
    %106 = vmatpush.msra.mxu0 0.0
    %107 = vmatpush.msra.mxu0 0.0
    %108 = vmatpush.msra.mxu0 %v85
    %109 = vmatpush.msra.mxu0 %v84
    %110 = vmatmul.f32.gmra.mxu0 %v92
    %v111 = vpop.f32.mrf.mxu0
    %v112 = vadd.f32 %v88, %v111
    %113 = vdwg.mxu0
    %v114 = vmax.f32 %v112, 0.0
    %v115 = vld [vmem:[%s4] sm:$0xff]
    %v116 = vld [vmem:[%s4 + $0x8] sm:$0xff]
    %v117 = vld [vmem:[%s4 + $0x10] sm:$0xff]
    %v118 = vld [vmem:[%s4 + $0x18] sm:$0xff]
    %v119 = vld [vmem:[%s5] sm:$0x1]
    %v121 = vperm.slane %v119, 0
    %vm123 = vcmask 261120
    %v125 = vsel %vm123, %v114, 0
    %127 = vmatpush.msra.mxu0 0.0
    %128 = vmatpush.msra.mxu0 0.0
    %129 = vmatpush.msra.mxu0 0.0
    %130 = vmatpush.msra.mxu0 0.0
    %131 = vmatpush.msra.mxu0 0.0
    %132 = vmatpush.msra.mxu0 0.0
    %133 = vmatpush.msra.mxu0 0.0
    %134 = vmatpush.msra.mxu0 0.0
    %135 = vmatpush.msra.mxu0 0.0
    %136 = vmatpush.msra.mxu0 0.0
    %137 = vmatpush.msra.mxu0 0.0
    %138 = vmatpush.msra.mxu0 0.0
    %139 = vmatpush.msra.mxu0 %v118
    %140 = vmatpush.msra.mxu0 %v117
    %141 = vmatpush.msra.mxu0 %v116
    %142 = vmatpush.msra.mxu0 %v115
    %143 = vmatmul.f32.gmra.mxu0 %v125
    %v144 = vpop.f32.mrf.mxu0
    %v145 = vadd.f32 %v121, %v144
    %146 = vdwg.mxu0
    %v147 = vmax.f32 %v145, 0.0
    %v148 = vld [vmem:[#allocation6] sm:$0xff]
    %v149 = vld [vmem:[#allocation6 + $0x8] sm:$0xff]
    %v150 = vld [vmem:[#allocation6 + $0x10] sm:$0xff]
    %v151 = vld [vmem:[#allocation6 + $0x18] sm:$0xff]
    %v152 = vld [vmem:[%s7] sm:$0x1]
    %v154 = vperm.slane %v152, 0
    %v157 = vsel %vm123, %v147, 0
    %159 = vmatpush.msra.mxu0 0.0
    %160 = vmatpush.msra.mxu0 0.0
    %161 = vmatpush.msra.mxu0 0.0
    %162 = vmatpush.msra.mxu0 0.0
    %163 = vmatpush.msra.mxu0 0.0
    %164 = vmatpush.msra.mxu0 0.0
    %165 = vmatpush.msra.mxu0 0.0
    %166 = vmatpush.msra.mxu0 0.0
    %167 = vmatpush.msra.mxu0 0.0
    %168 = vmatpush.msra.mxu0 0.0
    %169 = vmatpush.msra.mxu0 0.0
    %170 = vmatpush.msra.mxu0 0.0
    %171 = vmatpush.msra.mxu0 %v151
    %172 = vmatpush.msra.mxu0 %v150
    %173 = vmatpush.msra.mxu0 %v149
    %174 = vmatpush.msra.mxu0 %v148
    %175 = vmatmul.f32.gmra.mxu0 %v157
    %v176 = vpop.f32.mrf.mxu0
    %v177 = vadd.f32 %v154, %v176
    %178 = vdwg.mxu0
    %v180 = vrot.slane %v177, 7
    %v182 = vsub.f32 %v177, %v180
    %v183 = vld [vmem:[%s0] sm:$0xff]
    %v184 = vld [vmem:[%s0 + $0x8] sm:$0xff]
    %v185 = vld [vmem:[%s0 + $0x10] sm:$0xff]
    %v186 = vperm.slane %v183, 0
    %v187 = vlaneseq
    %v188 = vshrl.u32 %v187, 7
    %190 = vset.pattern.permute.xlu0 %v188
    %191 = vperm.xlu0 %190, %v186
    %v192 = vpop.permute.xlu0 %191
    %v193 = vperm.slane %v183, 1
    %v194 = vlaneseq
    %v195 = vshrl.u32 %v194, 7
    %197 = vset.pattern.permute.xlu0 %v195
    %198 = vperm.xlu0 %197, %v193
    %v199 = vpop.permute.xlu0 %198
    %v200 = vperm.slane %v183, 2
    %v201 = vlaneseq
    %v202 = vshrl.u32 %v201, 7
    %204 = vset.pattern.permute.xlu0 %v202
    %205 = vperm.xlu0 %204, %v200
    %v206 = vpop.permute.xlu0 %205
    %v207 = vperm.slane %v183, 3
    %v208 = vlaneseq
    %v209 = vshrl.u32 %v208, 7
    %211 = vset.pattern.permute.xlu0 %v209
    %212 = vperm.xlu0 %211, %v207
    %v213 = vpop.permute.xlu0 %212
    %v214 = vperm.slane %v183, 4
    %v215 = vlaneseq
    %v216 = vshrl.u32 %v215, 7
    %218 = vset.pattern.permute.xlu0 %v216
    %219 = vperm.xlu0 %218, %v214
    %v220 = vpop.permute.xlu0 %219
    %v221 = vperm.slane %v183, 5
    %v222 = vlaneseq
    %v223 = vshrl.u32 %v222, 7
    %225 = vset.pattern.permute.xlu0 %v223
    %226 = vperm.xlu0 %225, %v221
    %v227 = vpop.permute.xlu0 %226
    %v228 = vperm.slane %v183, 6
    %v229 = vlaneseq
    %v230 = vshrl.u32 %v229, 7
    %232 = vset.pattern.permute.xlu0 %v230
    %233 = vperm.xlu0 %232, %v228
    %v234 = vpop.permute.xlu0 %233
    %v235 = vperm.slane %v183, 7
    %v236 = vlaneseq
    %v237 = vshrl.u32 %v236, 7
    %239 = vset.pattern.permute.xlu0 %v237
    %240 = vperm.xlu0 %239, %v235
    %v241 = vpop.permute.xlu0 %240
    %v242 = vperm.slane %v184, 0
    %v243 = vlaneseq
    %v244 = vshrl.u32 %v243, 7
    %246 = vset.pattern.permute.xlu0 %v244
    %247 = vperm.xlu0 %246, %v242
    %v248 = vpop.permute.xlu0 %247
    %v249 = vperm.slane %v184, 1
    %v250 = vlaneseq
    %v251 = vshrl.u32 %v250, 7
    %253 = vset.pattern.permute.xlu0 %v251
    %254 = vperm.xlu0 %253, %v249
    %v255 = vpop.permute.xlu0 %254
    %v256 = vperm.slane %v184, 2
    %v257 = vlaneseq
    %v258 = vshrl.u32 %v257, 7
    %260 = vset.pattern.permute.xlu0 %v258
    %261 = vperm.xlu0 %260, %v256
    %v262 = vpop.permute.xlu0 %261
    %v263 = vperm.slane %v184, 3
    %v264 = vlaneseq
    %v265 = vshrl.u32 %v264, 7
    %267 = vset.pattern.permute.xlu0 %v265
    %268 = vperm.xlu0 %267, %v263
    %v269 = vpop.permute.xlu0 %268
    %v270 = vperm.slane %v184, 4
    %v271 = vlaneseq
    %v272 = vshrl.u32 %v271, 7
    %274 = vset.pattern.permute.xlu0 %v272
    %275 = vperm.xlu0 %274, %v270
    %v276 = vpop.permute.xlu0 %275
    %v277 = vperm.slane %v184, 5
    %v278 = vlaneseq
    %v279 = vshrl.u32 %v278, 7
    %281 = vset.pattern.permute.xlu0 %v279
    %282 = vperm.xlu0 %281, %v277
    %v283 = vpop.permute.xlu0 %282
    %v284 = vperm.slane %v184, 6
    %v285 = vlaneseq
    %v286 = vshrl.u32 %v285, 7
    %288 = vset.pattern.permute.xlu0 %v286
    %289 = vperm.xlu0 %288, %v284
    %v290 = vpop.permute.xlu0 %289
    %v291 = vperm.slane %v184, 7
    %v292 = vlaneseq
    %v293 = vshrl.u32 %v292, 7
    %295 = vset.pattern.permute.xlu0 %v293
    %296 = vperm.xlu0 %295, %v291
    %v297 = vpop.permute.xlu0 %296
    %v298 = vperm.slane %v185, 0
    %v299 = vlaneseq
    %v300 = vshrl.u32 %v299, 7
    %302 = vset.pattern.permute.xlu0 %v300
    %303 = vperm.xlu0 %302, %v298
    %v304 = vpop.permute.xlu0 %303
    %v305 = vperm.slane %v185, 1
    %v306 = vlaneseq
    %v307 = vshrl.u32 %v306, 7
    %309 = vset.pattern.permute.xlu0 %v307
    %310 = vperm.xlu0 %309, %v305
    %v311 = vpop.permute.xlu0 %310
    %v312 = vperm.slane %v185, 2
    %v313 = vlaneseq
    %v314 = vshrl.u32 %v313, 7
    %316 = vset.pattern.permute.xlu0 %v314
    %317 = vperm.xlu0 %316, %v312
    %v318 = vpop.permute.xlu0 %317
    %v319 = vperm.slane %v185, 3
    %v320 = vlaneseq
    %v321 = vshrl.u32 %v320, 7
    %323 = vset.pattern.permute.xlu0 %v321
    %324 = vperm.xlu0 %323, %v319
    %v325 = vpop.permute.xlu0 %324
    %v326 = vperm.slane %v185, 4
    %v327 = vlaneseq
    %v328 = vshrl.u32 %v327, 7
    %330 = vset.pattern.permute.xlu0 %v328
    %331 = vperm.xlu0 %330, %v326
    %v332 = vpop.permute.xlu0 %331
    %v333 = vperm.slane %v185, 5
    %v334 = vlaneseq
    %v335 = vshrl.u32 %v334, 7
    %337 = vset.pattern.permute.xlu0 %v335
    %338 = vperm.xlu0 %337, %v333
    %v339 = vpop.permute.xlu0 %338
    %v340 = vperm.slane %v185, 6
    %v341 = vlaneseq
    %v342 = vshrl.u32 %v341, 7
    %344 = vset.pattern.permute.xlu0 %v342
    %345 = vperm.xlu0 %344, %v340
    %v346 = vpop.permute.xlu0 %345
    %v347 = vperm.slane %v185, 7
    %v348 = vlaneseq
    %v349 = vshrl.u32 %v348, 7
    %351 = vset.pattern.permute.xlu0 %v349
    %352 = vperm.xlu0 %351, %v347
    %v353 = vpop.permute.xlu0 %352
    %v354 = vperm.slane %v182, 1
    %v355 = vmul.f32 %v192, %v354
    %v356 = vmul.f32 %v199, %v354
    %v357 = vmul.f32 %v206, %v354
    %v358 = vmul.f32 %v213, %v354
    %v359 = vmul.f32 %v220, %v354
    %v360 = vmul.f32 %v227, %v354
    %v361 = vmul.f32 %v234, %v354
    %v362 = vmul.f32 %v241, %v354
    %v363 = vmul.f32 %v248, %v354
    %v364 = vmul.f32 %v255, %v354
    %v365 = vmul.f32 %v262, %v354
    %v366 = vmul.f32 %v269, %v354
    %v367 = vmul.f32 %v276, %v354
    %v368 = vmul.f32 %v283, %v354
    %v369 = vmul.f32 %v290, %v354
    %v370 = vmul.f32 %v297, %v354
    %v371 = vmul.f32 %v304, %v354
    %v372 = vmul.f32 %v311, %v354
    %v373 = vmul.f32 %v318, %v354
    %v374 = vmul.f32 %v325, %v354
    %v375 = vmul.f32 %v332, %v354
    %v376 = vmul.f32 %v339, %v354
    %v377 = vmul.f32 %v346, %v354
    %v378 = vmul.f32 %v353, %v354
    %v379 = vperm.slane %v177, 0
    %v380 = vadd.f32 %v355, %v379
    %v381 = vadd.f32 %v356, %v379
    %v382 = vadd.f32 %v357, %v379
    %v383 = vadd.f32 %v358, %v379
    %v384 = vadd.f32 %v359, %v379
    %v385 = vadd.f32 %v360, %v379
    %v386 = vadd.f32 %v361, %v379
    %v387 = vadd.f32 %v362, %v379
    %v388 = vadd.f32 %v363, %v379
    %v389 = vadd.f32 %v364, %v379
    %v390 = vadd.f32 %v365, %v379
    %v391 = vadd.f32 %v366, %v379
    %v392 = vadd.f32 %v367, %v379
    %v393 = vadd.f32 %v368, %v379
    %v394 = vadd.f32 %v369, %v379
    %v395 = vadd.f32 %v370, %v379
    %v396 = vadd.f32 %v371, %v379
    %v397 = vadd.f32 %v372, %v379
    %v398 = vadd.f32 %v373, %v379
    %v399 = vadd.f32 %v374, %v379
    %v400 = vadd.f32 %v375, %v379
    %v401 = vadd.f32 %v376, %v379
    %v402 = vadd.f32 %v377, %v379
    %v403 = vadd.f32 %v378, %v379
    %vm404 = vcmask 785408
    %405 = vst.msk [vmem:[#allocation2] sm:$0xff] %vm404, %v380
    %406 = vst.msk [vmem:[#allocation2 + $0x8] sm:$0xff] %vm404, %v381
    %407 = vst.msk [vmem:[#allocation2 + $0x10] sm:$0xff] %vm404, %v382
    %408 = vst.msk [vmem:[#allocation2 + $0x18] sm:$0xff] %vm404, %v383
    %409 = vst.msk [vmem:[#allocation2 + $0x20] sm:$0xff] %vm404, %v384
    %410 = vst.msk [vmem:[#allocation2 + $0x28] sm:$0xff] %vm404, %v385
    %411 = vst.msk [vmem:[#allocation2 + $0x30] sm:$0xff] %vm404, %v386
    %412 = vst.msk [vmem:[#allocation2 + $0x38] sm:$0xff] %vm404, %v387
    %413 = vst.msk [vmem:[#allocation2 + $0x40] sm:$0xff] %vm404, %v388
    %414 = vst.msk [vmem:[#allocation2 + $0x48] sm:$0xff] %vm404, %v389
    %415 = vst.msk [vmem:[#allocation2 + $0x50] sm:$0xff] %vm404, %v390
    %416 = vst.msk [vmem:[#allocation2 + $0x58] sm:$0xff] %vm404, %v391
    %417 = vst.msk [vmem:[#allocation2 + $0x60] sm:$0xff] %vm404, %v392
    %418 = vst.msk [vmem:[#allocation2 + $0x68] sm:$0xff] %vm404, %v393
    %419 = vst.msk [vmem:[#allocation2 + $0x70] sm:$0xff] %vm404, %v394
    %420 = vst.msk [vmem:[#allocation2 + $0x78] sm:$0xff] %vm404, %v395
    %421 = vst.msk [vmem:[#allocation2 + $0x80] sm:$0xff] %vm404, %v396
    %422 = vst.msk [vmem:[#allocation2 + $0x88] sm:$0xff] %vm404, %v397
    %423 = vst.msk [vmem:[#allocation2 + $0x90] sm:$0xff] %vm404, %v398
    %424 = vst.msk [vmem:[#allocation2 + $0x98] sm:$0xff] %vm404, %v399
    %425 = vst.msk [vmem:[#allocation2 + $0xa0] sm:$0xff] %vm404, %v400
    %426 = vst.msk [vmem:[#allocation2 + $0xa8] sm:$0xff] %vm404, %v401
    %427 = vst.msk [vmem:[#allocation2 + $0xb0] sm:$0xff] %vm404, %v402
    %428 = vst.msk [vmem:[#allocation2 + $0xb8] sm:$0xff] %vm404, %v403
    %v429 = vld [vmem:[#allocation8] sm:$0xff]
    %v430 = vld [vmem:[#allocation8 + $0x8] sm:$0xff]
    %v431 = vld [vmem:[#allocation8 + $0x10] sm:$0xff]
    %v432 = vld [vmem:[#allocation8 + $0x18] sm:$0xff]
    %v433 = vld [vmem:[%s9] sm:$0x1]
    %v435 = vperm.slane %v433, 0
    %v436 = vld [vmem:[#allocation2] sm:$0xff]
    %v438 = vsel %vm123, 0.0, 0
    %440 = vmatpush.msra.mxu0 0.0
    %441 = vmatpush.msra.mxu0 0.0
    %442 = vmatpush.msra.mxu0 0.0
    %443 = vmatpush.msra.mxu0 0.0
    %444 = vmatpush.msra.mxu0 0.0
    %445 = vmatpush.msra.mxu0 0.0
    %446 = vmatpush.msra.mxu0 0.0
    %447 = vmatpush.msra.mxu0 0.0
    %448 = vmatpush.msra.mxu0 0.0
    %449 = vmatpush.msra.mxu0 0.0
    %450 = vmatpush.msra.mxu0 0.0
    %451 = vmatpush.msra.mxu0 0.0
    %452 = vmatpush.msra.mxu0 %v432
    %453 = vmatpush.msra.mxu0 %v431
    %454 = vmatpush.msra.mxu0 %v430
    %455 = vmatpush.msra.mxu0 %v429
    %456 = vmatmul.f32.gmra.mxu0 %v438
    %v457 = vpop.f32.mrf.mxu0
    %v458 = vadd.f32 0.0, %v457
    %459 = vdwg.mxu0
    %v460 = vadd.f32 %v436, %v458
    %v461 = vxor.u32 %v460, 2147483648
    %v462 = vmul.f32 %v461, 1.442695
    %v463 = vpow.pop %v462
    %v464 = vadd.f32 %v463, 1.0
    %v465 = vrcp.pop %v464
    %v466 = vmul.f32 %v464, %v465
    %v467 = vsub.f32 1.0, %v466
    %v468 = vmul.f32 %v465, %v467
    %v469 = vadd.f32 %v465, %v468
    %vm470 = vweird.f32 %v464
    %vm471 = vweird.f32 %v465
    %vm472 = vmor %vm470, %vm471
    %v473 = vsel %vm472, %v465, %v469
    %v474 = vand.u32 2147483647, %v464
    %vm475 = vcmp.eq.f32.partialorder %v474, 8.507059e+37
    %v476 = vand.u32 %v464, 2147483648
    %v477 = vor.u32 1.1754944e-38, %v476
    %v478 = vsel %vm475, %v477, %v473
    %v479 = vmul.f32 1.0, %v478
    %480 = vrot.lane.b32.xlu0 %v435, 64
    %v481 = vpop.permute.xlu0 %480
    %v483 = vadd.f32 %v458, %v481
    %485 = vrot.lane.b32.xlu0 %v483, 64
    %v486 = vpop.permute.xlu0 %485
    %v488 = vmul.f32 %v479, %v486
    %490 = vrot.lane.b32.xlu0 %v488, 64
    %v491 = vpop.permute.xlu0 %490
    %v493 = vadd.f32 %v436, %v491
    %v494 = vtanh.pop %v493
    %v495 = vsub.f32 0.0, %v494
    %497 = vrot.lane.b32.xlu0 %v495, 96
    %v498 = vpop.permute.xlu0 %497
    %v500 = vmul.f32 %v479, %v498
    %502 = vrot.lane.b32.xlu0 %v500, 32
    %v503 = vpop.permute.xlu0 %502
    %v505 = vadd.f32 %v494, %v503
    %s506 = scalar_lea.vmem [#allocation2], 8
    %v507 = vld [vmem:[%s506] sm:$0xff]
    %509 = vrot.lane.b32.xlu0 %v505, 64
    %v510 = vpop.permute.xlu0 %509
    %v511 = vsel %vm123, %v510, 0
    %513 = vmatpush.msra.mxu0 0.0
    %514 = vmatpush.msra.mxu0 0.0
    %515 = vmatpush.msra.mxu0 0.0
    %516 = vmatpush.msra.mxu0 0.0
    %517 = vmatpush.msra.mxu0 0.0
    %518 = vmatpush.msra.mxu0 0.0
    %519 = vmatpush.msra.mxu0 0.0
    %520 = vmatpush.msra.mxu0 0.0
    %521 = vmatpush.msra.mxu0 0.0
    %522 = vmatpush.msra.mxu0 0.0
    %523 = vmatpush.msra.mxu0 0.0
    %524 = vmatpush.msra.mxu0 0.0
    %525 = vmatpush.msra.mxu0 %v432
    %526 = vmatpush.msra.mxu0 %v431
    %527 = vmatpush.msra.mxu0 %v430
    %528 = vmatpush.msra.mxu0 %v429
    %529 = vmatmul.f32.gmra.mxu0 %v511
    %v530 = vpop.f32.mrf.mxu0
    %v531 = vadd.f32 0.0, %v530
    %532 = vdwg.mxu0
    %v533 = vadd.f32 %v507, %v531
    %v534 = vxor.u32 %v533, 2147483648
    %v535 = vmul.f32 %v534, 1.442695
    %v536 = vpow.pop %v535
    %v537 = vadd.f32 %v536, 1.0
    %v538 = vrcp.pop %v537
    %v539 = vmul.f32 %v537, %v538
    %v540 = vsub.f32 1.0, %v539
    %v541 = vmul.f32 %v538, %v540
    %v542 = vadd.f32 %v538, %v541
    %vm543 = vweird.f32 %v537
    %vm544 = vweird.f32 %v538
    %vm545 = vmor %vm543, %vm544
    %v546 = vsel %vm545, %v538, %v542
    %v547 = vand.u32 2147483647, %v537
    %vm548 = vcmp.eq.f32.partialorder %v547, 8.507059e+37
    %v549 = vand.u32 %v537, 2147483648
    %v550 = vor.u32 1.1754944e-38, %v549
    %v551 = vsel %vm548, %v550, %v546
    %v552 = vmul.f32 1.0, %v551
    %v553 = vadd.f32 %v531, %v481
    %555 = vrot.lane.b32.xlu0 %v553, 64
    %v556 = vpop.permute.xlu0 %555
    %v558 = vmul.f32 %v552, %v556
    %560 = vrot.lane.b32.xlu0 %v558, 64
    %v561 = vpop.permute.xlu0 %560
    %v563 = vadd.f32 %v507, %v561
    %v564 = vtanh.pop %v563
    %v565 = vsub.f32 %v505, %v564
    %567 = vrot.lane.b32.xlu0 %v565, 96
    %v568 = vpop.permute.xlu0 %567
    %v570 = vmul.f32 %v552, %v568
    %572 = vrot.lane.b32.xlu0 %v570, 32
    %v573 = vpop.permute.xlu0 %572
    %v575 = vadd.f32 %v564, %v573
    %s576 = scalar_lea.vmem [#allocation2], 16
    %v577 = vld [vmem:[%s576] sm:$0xff]
    %579 = vrot.lane.b32.xlu0 %v575, 64
    %v580 = vpop.permute.xlu0 %579
    %v581 = vsel %vm123, %v580, 0
    %583 = vmatpush.msra.mxu0 0.0
    %584 = vmatpush.msra.mxu0 0.0
    %585 = vmatpush.msra.mxu0 0.0
    %586 = vmatpush.msra.mxu0 0.0
    %587 = vmatpush.msra.mxu0 0.0
    %588 = vmatpush.msra.mxu0 0.0
    %589 = vmatpush.msra.mxu0 0.0
    %590 = vmatpush.msra.mxu0 0.0
    %591 = vmatpush.msra.mxu0 0.0
    %592 = vmatpush.msra.mxu0 0.0
    %593 = vmatpush.msra.mxu0 0.0
    %594 = vmatpush.msra.mxu0 0.0
    %595 = vmatpush.msra.mxu0 %v432
    %596 = vmatpush.msra.mxu0 %v431
    %597 = vmatpush.msra.mxu0 %v430
    %598 = vmatpush.msra.mxu0 %v429
    %599 = vmatmul.f32.gmra.mxu0 %v581
    %v600 = vpop.f32.mrf.mxu0
    %v601 = vadd.f32 0.0, %v600
    %602 = vdwg.mxu0
    %v603 = vadd.f32 %v577, %v601
    %v604 = vxor.u32 %v603, 2147483648
    %v605 = vmul.f32 %v604, 1.442695
    %v606 = vpow.pop %v605
    %v607 = vadd.f32 %v606, 1.0
    %v608 = vrcp.pop %v607
    %v609 = vmul.f32 %v607, %v608
    %v610 = vsub.f32 1.0, %v609
    %v611 = vmul.f32 %v608, %v610
    %v612 = vadd.f32 %v608, %v611
    %vm613 = vweird.f32 %v607
    %vm614 = vweird.f32 %v608
    %vm615 = vmor %vm613, %vm614
    %v616 = vsel %vm615, %v608, %v612
    %v617 = vand.u32 2147483647, %v607
    %vm618 = vcmp.eq.f32.partialorder %v617, 8.507059e+37
    %v619 = vand.u32 %v607, 2147483648
    %v620 = vor.u32 1.1754944e-38, %v619
    %v621 = vsel %vm618, %v620, %v616
    %v622 = vmul.f32 1.0, %v621
    %v623 = vadd.f32 %v601, %v481
    %625 = vrot.lane.b32.xlu0 %v623, 64
    %v626 = vpop.permute.xlu0 %625
    %v628 = vmul.f32 %v622, %v626
    %630 = vrot.lane.b32.xlu0 %v628, 64
    %v631 = vpop.permute.xlu0 %630
    %v633 = vadd.f32 %v577, %v631
    %v634 = vtanh.pop %v633
    %v635 = vsub.f32 %v575, %v634
    %637 = vrot.lane.b32.xlu0 %v635, 96
    %v638 = vpop.permute.xlu0 %637
    %v640 = vmul.f32 %v622, %v638
    %642 = vrot.lane.b32.xlu0 %v640, 32
    %v643 = vpop.permute.xlu0 %642
    %v645 = vadd.f32 %v634, %v643
    %s646 = scalar_lea.vmem [#allocation2], 24
    %v647 = vld [vmem:[%s646] sm:$0xff]
    %649 = vrot.lane.b32.xlu0 %v645, 64
    %v650 = vpop.permute.xlu0 %649
    %v651 = vsel %vm123, %v650, 0
    %653 = vmatpush.msra.mxu0 0.0
    %654 = vmatpush.msra.mxu0 0.0
    %655 = vmatpush.msra.mxu0 0.0
    %656 = vmatpush.msra.mxu0 0.0
    %657 = vmatpush.msra.mxu0 0.0
    %658 = vmatpush.msra.mxu0 0.0
    %659 = vmatpush.msra.mxu0 0.0
    %660 = vmatpush.msra.mxu0 0.0
    %661 = vmatpush.msra.mxu0 0.0
    %662 = vmatpush.msra.mxu0 0.0
    %663 = vmatpush.msra.mxu0 0.0
    %664 = vmatpush.msra.mxu0 0.0
    %665 = vmatpush.msra.mxu0 %v432
    %666 = vmatpush.msra.mxu0 %v431
    %667 = vmatpush.msra.mxu0 %v430
    %668 = vmatpush.msra.mxu0 %v429
    %669 = vmatmul.f32.gmra.mxu0 %v651
    %v670 = vpop.f32.mrf.mxu0
    %v671 = vadd.f32 0.0, %v670
    %672 = vdwg.mxu0
    %v673 = vadd.f32 %v647, %v671
    %v674 = vxor.u32 %v673, 2147483648
    %v675 = vmul.f32 %v674, 1.442695
    %v676 = vpow.pop %v675
    %v677 = vadd.f32 %v676, 1.0
    %v678 = vrcp.pop %v677
    %v679 = vmul.f32 %v677, %v678
    %v680 = vsub.f32 1.0, %v679
    %v681 = vmul.f32 %v678, %v680
    %v682 = vadd.f32 %v678, %v681
    %vm683 = vweird.f32 %v677
    %vm684 = vweird.f32 %v678
    %vm685 = vmor %vm683, %vm684
    %v686 = vsel %vm685, %v678, %v682
    %v687 = vand.u32 2147483647, %v677
    %vm688 = vcmp.eq.f32.partialorder %v687, 8.507059e+37
    %v689 = vand.u32 %v677, 2147483648
    %v690 = vor.u32 1.1754944e-38, %v689
    %v691 = vsel %vm688, %v690, %v686
    %v692 = vmul.f32 1.0, %v691
    %v693 = vadd.f32 %v671, %v481
    %695 = vrot.lane.b32.xlu0 %v693, 64
    %v696 = vpop.permute.xlu0 %695
    %v698 = vmul.f32 %v692, %v696
    %700 = vrot.lane.b32.xlu0 %v698, 64
    %v701 = vpop.permute.xlu0 %700
    %v703 = vadd.f32 %v647, %v701
    %v704 = vtanh.pop %v703
    %v705 = vsub.f32 %v645, %v704
    %707 = vrot.lane.b32.xlu0 %v705, 96
    %v708 = vpop.permute.xlu0 %707
    %v710 = vmul.f32 %v692, %v708
    %712 = vrot.lane.b32.xlu0 %v710, 32
    %v713 = vpop.permute.xlu0 %712
    %v715 = vadd.f32 %v704, %v713
    %s716 = scalar_lea.vmem [#allocation2], 32
    %v717 = vld [vmem:[%s716] sm:$0xff]
    %719 = vrot.lane.b32.xlu0 %v715, 64
    %v720 = vpop.permute.xlu0 %719
    %v721 = vsel %vm123, %v720, 0
    %723 = vmatpush.msra.mxu0 0.0
    %724 = vmatpush.msra.mxu0 0.0
    %725 = vmatpush.msra.mxu0 0.0
    %726 = vmatpush.msra.mxu0 0.0
    %727 = vmatpush.msra.mxu0 0.0
    %728 = vmatpush.msra.mxu0 0.0
    %729 = vmatpush.msra.mxu0 0.0
    %730 = vmatpush.msra.mxu0 0.0
    %731 = vmatpush.msra.mxu0 0.0
    %732 = vmatpush.msra.mxu0 0.0
    %733 = vmatpush.msra.mxu0 0.0
    %734 = vmatpush.msra.mxu0 0.0
    %735 = vmatpush.msra.mxu0 %v432
    %736 = vmatpush.msra.mxu0 %v431
    %737 = vmatpush.msra.mxu0 %v430
    %738 = vmatpush.msra.mxu0 %v429
    %739 = vmatmul.f32.gmra.mxu0 %v721
    %v740 = vpop.f32.mrf.mxu0
    %v741 = vadd.f32 0.0, %v740
    %742 = vdwg.mxu0
    %v743 = vadd.f32 %v717, %v741
    %v744 = vxor.u32 %v743, 2147483648
    %v745 = vmul.f32 %v744, 1.442695
    %v746 = vpow.pop %v745
    %v747 = vadd.f32 %v746, 1.0
    %v748 = vrcp.pop %v747
    %v749 = vmul.f32 %v747, %v748
    %v750 = vsub.f32 1.0, %v749
    %v751 = vmul.f32 %v748, %v750
    %v752 = vadd.f32 %v748, %v751
    %vm753 = vweird.f32 %v747
    %vm754 = vweird.f32 %v748
    %vm755 = vmor %vm753, %vm754
    %v756 = vsel %vm755, %v748, %v752
    %v757 = vand.u32 2147483647, %v747
    %vm758 = vcmp.eq.f32.partialorder %v757, 8.507059e+37
    %v759 = vand.u32 %v747, 2147483648
    %v760 = vor.u32 1.1754944e-38, %v759
    %v761 = vsel %vm758, %v760, %v756
    %v762 = vmul.f32 1.0, %v761
    %v763 = vadd.f32 %v741, %v481
    %765 = vrot.lane.b32.xlu0 %v763, 64
    %v766 = vpop.permute.xlu0 %765
    %v768 = vmul.f32 %v762, %v766
    %770 = vrot.lane.b32.xlu0 %v768, 64
    %v771 = vpop.permute.xlu0 %770
    %v773 = vadd.f32 %v717, %v771
    %v774 = vtanh.pop %v773
    %v775 = vsub.f32 %v715, %v774
    %777 = vrot.lane.b32.xlu0 %v775, 96
    %v778 = vpop.permute.xlu0 %777
    %v780 = vmul.f32 %v762, %v778
    %782 = vrot.lane.b32.xlu0 %v780, 32
    %v783 = vpop.permute.xlu0 %782
    %v785 = vadd.f32 %v774, %v783
    %s786 = scalar_lea.vmem [#allocation2], 40
    %v787 = vld [vmem:[%s786] sm:$0xff]
    %789 = vrot.lane.b32.xlu0 %v785, 64
    %v790 = vpop.permute.xlu0 %789
    %v791 = vsel %vm123, %v790, 0
    %793 = vmatpush.msra.mxu0 0.0
    %794 = vmatpush.msra.mxu0 0.0
    %795 = vmatpush.msra.mxu0 0.0
    %796 = vmatpush.msra.mxu0 0.0
    %797 = vmatpush.msra.mxu0 0.0
    %798 = vmatpush.msra.mxu0 0.0
    %799 = vmatpush.msra.mxu0 0.0
    %800 = vmatpush.msra.mxu0 0.0
    %801 = vmatpush.msra.mxu0 0.0
    %802 = vmatpush.msra.mxu0 0.0
    %803 = vmatpush.msra.mxu0 0.0
    %804 = vmatpush.msra.mxu0 0.0
    %805 = vmatpush.msra.mxu0 %v432
    %806 = vmatpush.msra.mxu0 %v431
    %807 = vmatpush.msra.mxu0 %v430
    %808 = vmatpush.msra.mxu0 %v429
    %809 = vmatmul.f32.gmra.mxu0 %v791
    %v810 = vpop.f32.mrf.mxu0
    %v811 = vadd.f32 0.0, %v810
    %812 = vdwg.mxu0
    %v813 = vadd.f32 %v787, %v811
    %v814 = vxor.u32 %v813, 2147483648
    %v815 = vmul.f32 %v814, 1.442695
    %v816 = vpow.pop %v815
    %v817 = vadd.f32 %v816, 1.0
    %v818 = vrcp.pop %v817
    %v819 = vmul.f32 %v817, %v818
    %v820 = vsub.f32 1.0, %v819
    %v821 = vmul.f32 %v818, %v820
    %v822 = vadd.f32 %v818, %v821
    %vm823 = vweird.f32 %v817
    %vm824 = vweird.f32 %v818
    %vm825 = vmor %vm823, %vm824
    %v826 = vsel %vm825, %v818, %v822
    %v827 = vand.u32 2147483647, %v817
    %vm828 = vcmp.eq.f32.partialorder %v827, 8.507059e+37
    %v829 = vand.u32 %v817, 2147483648
    %v830 = vor.u32 1.1754944e-38, %v829
    %v831 = vsel %vm828, %v830, %v826
    %v832 = vmul.f32 1.0, %v831
    %v833 = vadd.f32 %v811, %v481
    %835 = vrot.lane.b32.xlu0 %v833, 64
    %v836 = vpop.permute.xlu0 %835
    %v838 = vmul.f32 %v832, %v836
    %840 = vrot.lane.b32.xlu0 %v838, 64
    %v841 = vpop.permute.xlu0 %840
    %v843 = vadd.f32 %v787, %v841
    %v844 = vtanh.pop %v843
    %v845 = vsub.f32 %v785, %v844
    %847 = vrot.lane.b32.xlu0 %v845, 96
    %v848 = vpop.permute.xlu0 %847
    %v850 = vmul.f32 %v832, %v848
    %852 = vrot.lane.b32.xlu0 %v850, 32
    %v853 = vpop.permute.xlu0 %852
    %v855 = vadd.f32 %v844, %v853
    %s856 = scalar_lea.vmem [#allocation2], 48
    %v857 = vld [vmem:[%s856] sm:$0xff]
    %859 = vrot.lane.b32.xlu0 %v855, 64
    %v860 = vpop.permute.xlu0 %859
    %v861 = vsel %vm123, %v860, 0
    %863 = vmatpush.msra.mxu0 0.0
    %864 = vmatpush.msra.mxu0 0.0
    %865 = vmatpush.msra.mxu0 0.0
    %866 = vmatpush.msra.mxu0 0.0
    %867 = vmatpush.msra.mxu0 0.0
    %868 = vmatpush.msra.mxu0 0.0
    %869 = vmatpush.msra.mxu0 0.0
    %870 = vmatpush.msra.mxu0 0.0
    %871 = vmatpush.msra.mxu0 0.0
    %872 = vmatpush.msra.mxu0 0.0
    %873 = vmatpush.msra.mxu0 0.0
    %874 = vmatpush.msra.mxu0 0.0
    %875 = vmatpush.msra.mxu0 %v432
    %876 = vmatpush.msra.mxu0 %v431
    %877 = vmatpush.msra.mxu0 %v430
    %878 = vmatpush.msra.mxu0 %v429
    %879 = vmatmul.f32.gmra.mxu0 %v861
    %v880 = vpop.f32.mrf.mxu0
    %v881 = vadd.f32 0.0, %v880
    %882 = vdwg.mxu0
    %v883 = vadd.f32 %v857, %v881
    %v884 = vxor.u32 %v883, 2147483648
    %v885 = vmul.f32 %v884, 1.442695
    %v886 = vpow.pop %v885
    %v887 = vadd.f32 %v886, 1.0
    %v888 = vrcp.pop %v887
    %v889 = vmul.f32 %v887, %v888
    %v890 = vsub.f32 1.0, %v889
    %v891 = vmul.f32 %v888, %v890
    %v892 = vadd.f32 %v888, %v891
    %vm893 = vweird.f32 %v887
    %vm894 = vweird.f32 %v888
    %vm895 = vmor %vm893, %vm894
    %v896 = vsel %vm895, %v888, %v892
    %v897 = vand.u32 2147483647, %v887
    %vm898 = vcmp.eq.f32.partialorder %v897, 8.507059e+37
    %v899 = vand.u32 %v887, 2147483648
    %v900 = vor.u32 1.1754944e-38, %v899
    %v901 = vsel %vm898, %v900, %v896
    %v902 = vmul.f32 1.0, %v901
    %v903 = vadd.f32 %v881, %v481
    %905 = vrot.lane.b32.xlu0 %v903, 64
    %v906 = vpop.permute.xlu0 %905
    %v908 = vmul.f32 %v902, %v906
    %910 = vrot.lane.b32.xlu0 %v908, 64
    %v911 = vpop.permute.xlu0 %910
    %v913 = vadd.f32 %v857, %v911
    %v914 = vtanh.pop %v913
    %v915 = vsub.f32 %v855, %v914
    %917 = vrot.lane.b32.xlu0 %v915, 96
    %v918 = vpop.permute.xlu0 %917
    %v920 = vmul.f32 %v902, %v918
    %922 = vrot.lane.b32.xlu0 %v920, 32
    %v923 = vpop.permute.xlu0 %922
    %v925 = vadd.f32 %v914, %v923
    %s926 = scalar_lea.vmem [#allocation2], 56
    %v927 = vld [vmem:[%s926] sm:$0xff]
    %929 = vrot.lane.b32.xlu0 %v925, 64
    %v930 = vpop.permute.xlu0 %929
    %v931 = vsel %vm123, %v930, 0
    %933 = vmatpush.msra.mxu0 0.0
    %934 = vmatpush.msra.mxu0 0.0
    %935 = vmatpush.msra.mxu0 0.0
    %936 = vmatpush.msra.mxu0 0.0
    %937 = vmatpush.msra.mxu0 0.0
    %938 = vmatpush.msra.mxu0 0.0
    %939 = vmatpush.msra.mxu0 0.0
    %940 = vmatpush.msra.mxu0 0.0
    %941 = vmatpush.msra.mxu0 0.0
    %942 = vmatpush.msra.mxu0 0.0
    %943 = vmatpush.msra.mxu0 0.0
    %944 = vmatpush.msra.mxu0 0.0
    %945 = vmatpush.msra.mxu0 %v432
    %946 = vmatpush.msra.mxu0 %v431
    %947 = vmatpush.msra.mxu0 %v430
    %948 = vmatpush.msra.mxu0 %v429
    %949 = vmatmul.f32.gmra.mxu0 %v931
    %v950 = vpop.f32.mrf.mxu0
    %v951 = vadd.f32 0.0, %v950
    %952 = vdwg.mxu0
    %v953 = vadd.f32 %v927, %v951
    %v954 = vxor.u32 %v953, 2147483648
    %v955 = vmul.f32 %v954, 1.442695
    %v956 = vpow.pop %v955
    %v957 = vadd.f32 %v956, 1.0
    %v958 = vrcp.pop %v957
    %v959 = vmul.f32 %v957, %v958
    %v960 = vsub.f32 1.0, %v959
    %v961 = vmul.f32 %v958, %v960
    %v962 = vadd.f32 %v958, %v961
    %vm963 = vweird.f32 %v957
    %vm964 = vweird.f32 %v958
    %vm965 = vmor %vm963, %vm964
    %v966 = vsel %vm965, %v958, %v962
    %v967 = vand.u32 2147483647, %v957
    %vm968 = vcmp.eq.f32.partialorder %v967, 8.507059e+37
    %v969 = vand.u32 %v957, 2147483648
    %v970 = vor.u32 1.1754944e-38, %v969
    %v971 = vsel %vm968, %v970, %v966
    %v972 = vmul.f32 1.0, %v971
    %v973 = vadd.f32 %v951, %v481
    %975 = vrot.lane.b32.xlu0 %v973, 64
    %v976 = vpop.permute.xlu0 %975
    %v978 = vmul.f32 %v972, %v976
    %980 = vrot.lane.b32.xlu0 %v978, 64
    %v981 = vpop.permute.xlu0 %980
    %v983 = vadd.f32 %v927, %v981
    %v984 = vtanh.pop %v983
    %v985 = vsub.f32 %v925, %v984
    %987 = vrot.lane.b32.xlu0 %v985, 96
    %v988 = vpop.permute.xlu0 %987
    %v990 = vmul.f32 %v972, %v988
    %992 = vrot.lane.b32.xlu0 %v990, 32
    %v993 = vpop.permute.xlu0 %992
    %v995 = vadd.f32 %v984, %v993
    %s996 = scalar_lea.vmem [#allocation2], 64
    %v997 = vld [vmem:[%s996] sm:$0xff]
    %999 = vrot.lane.b32.xlu0 %v995, 64
    %v1000 = vpop.permute.xlu0 %999
    %v1001 = vsel %vm123, %v1000, 0
    %1003 = vmatpush.msra.mxu0 0.0
    %1004 = vmatpush.msra.mxu0 0.0
    %1005 = vmatpush.msra.mxu0 0.0
    %1006 = vmatpush.msra.mxu0 0.0
    %1007 = vmatpush.msra.mxu0 0.0
    %1008 = vmatpush.msra.mxu0 0.0
    %1009 = vmatpush.msra.mxu0 0.0
    %1010 = vmatpush.msra.mxu0 0.0
    %1011 = vmatpush.msra.mxu0 0.0
    %1012 = vmatpush.msra.mxu0 0.0
    %1013 = vmatpush.msra.mxu0 0.0
    %1014 = vmatpush.msra.mxu0 0.0
    %1015 = vmatpush.msra.mxu0 %v432
    %1016 = vmatpush.msra.mxu0 %v431
    %1017 = vmatpush.msra.mxu0 %v430
    %1018 = vmatpush.msra.mxu0 %v429
    %1019 = vmatmul.f32.gmra.mxu0 %v1001
    %v1020 = vpop.f32.mrf.mxu0
    %v1021 = vadd.f32 0.0, %v1020
    %1022 = vdwg.mxu0
    %v1023 = vadd.f32 %v997, %v1021
    %v1024 = vxor.u32 %v1023, 2147483648
    %v1025 = vmul.f32 %v1024, 1.442695
    %v1026 = vpow.pop %v1025
    %v1027 = vadd.f32 %v1026, 1.0
    %v1028 = vrcp.pop %v1027
    %v1029 = vmul.f32 %v1027, %v1028
    %v1030 = vsub.f32 1.0, %v1029
    %v1031 = vmul.f32 %v1028, %v1030
    %v1032 = vadd.f32 %v1028, %v1031
    %vm1033 = vweird.f32 %v1027
    %vm1034 = vweird.f32 %v1028
    %vm1035 = vmor %vm1033, %vm1034
    %v1036 = vsel %vm1035, %v1028, %v1032
    %v1037 = vand.u32 2147483647, %v1027
    %vm1038 = vcmp.eq.f32.partialorder %v1037, 8.507059e+37
    %v1039 = vand.u32 %v1027, 2147483648
    %v1040 = vor.u32 1.1754944e-38, %v1039
    %v1041 = vsel %vm1038, %v1040, %v1036
    %v1042 = vmul.f32 1.0, %v1041
    %v1043 = vadd.f32 %v1021, %v481
    %1045 = vrot.lane.b32.xlu0 %v1043, 64
    %v1046 = vpop.permute.xlu0 %1045
    %v1048 = vmul.f32 %v1042, %v1046
    %1050 = vrot.lane.b32.xlu0 %v1048, 64
    %v1051 = vpop.permute.xlu0 %1050
    %v1053 = vadd.f32 %v997, %v1051
    %v1054 = vtanh.pop %v1053
    %v1055 = vsub.f32 %v995, %v1054
    %1057 = vrot.lane.b32.xlu0 %v1055, 96
    %v1058 = vpop.permute.xlu0 %1057
    %v1060 = vmul.f32 %v1042, %v1058
    %1062 = vrot.lane.b32.xlu0 %v1060, 32
    %v1063 = vpop.permute.xlu0 %1062
    %v1065 = vadd.f32 %v1054, %v1063
    %s1066 = scalar_lea.vmem [#allocation2], 72
    %v1067 = vld [vmem:[%s1066] sm:$0xff]
    %1069 = vrot.lane.b32.xlu0 %v1065, 64
    %v1070 = vpop.permute.xlu0 %1069
    %v1071 = vsel %vm123, %v1070, 0
    %1073 = vmatpush.msra.mxu0 0.0
    %1074 = vmatpush.msra.mxu0 0.0
    %1075 = vmatpush.msra.mxu0 0.0
    %1076 = vmatpush.msra.mxu0 0.0
    %1077 = vmatpush.msra.mxu0 0.0
    %1078 = vmatpush.msra.mxu0 0.0
    %1079 = vmatpush.msra.mxu0 0.0
    %1080 = vmatpush.msra.mxu0 0.0
    %1081 = vmatpush.msra.mxu0 0.0
    %1082 = vmatpush.msra.mxu0 0.0
    %1083 = vmatpush.msra.mxu0 0.0
    %1084 = vmatpush.msra.mxu0 0.0
    %1085 = vmatpush.msra.mxu0 %v432
    %1086 = vmatpush.msra.mxu0 %v431
    %1087 = vmatpush.msra.mxu0 %v430
    %1088 = vmatpush.msra.mxu0 %v429
    %1089 = vmatmul.f32.gmra.mxu0 %v1071
    %v1090 = vpop.f32.mrf.mxu0
    %v1091 = vadd.f32 0.0, %v1090
    %1092 = vdwg.mxu0
    %v1093 = vadd.f32 %v1067, %v1091
    %v1094 = vxor.u32 %v1093, 2147483648
    %v1095 = vmul.f32 %v1094, 1.442695
    %v1096 = vpow.pop %v1095
    %v1097 = vadd.f32 %v1096, 1.0
    %v1098 = vrcp.pop %v1097
    %v1099 = vmul.f32 %v1097, %v1098
    %v1100 = vsub.f32 1.0, %v1099
    %v1101 = vmul.f32 %v1098, %v1100
    %v1102 = vadd.f32 %v1098, %v1101
    %vm1103 = vweird.f32 %v1097
    %vm1104 = vweird.f32 %v1098
    %vm1105 = vmor %vm1103, %vm1104
    %v1106 = vsel %vm1105, %v1098, %v1102
    %v1107 = vand.u32 2147483647, %v1097
    %vm1108 = vcmp.eq.f32.partialorder %v1107, 8.507059e+37
    %v1109 = vand.u32 %v1097, 2147483648
    %v1110 = vor.u32 1.1754944e-38, %v1109
    %v1111 = vsel %vm1108, %v1110, %v1106
    %v1112 = vmul.f32 1.0, %v1111
    %v1113 = vadd.f32 %v1091, %v481
    %1115 = vrot.lane.b32.xlu0 %v1113, 64
    %v1116 = vpop.permute.xlu0 %1115
    %v1118 = vmul.f32 %v1112, %v1116
    %1120 = vrot.lane.b32.xlu0 %v1118, 64
    %v1121 = vpop.permute.xlu0 %1120
    %v1123 = vadd.f32 %v1067, %v1121
    %v1124 = vtanh.pop %v1123
    %v1125 = vsub.f32 %v1065, %v1124
    %1127 = vrot.lane.b32.xlu0 %v1125, 96
    %v1128 = vpop.permute.xlu0 %1127
    %v1130 = vmul.f32 %v1112, %v1128
    %1132 = vrot.lane.b32.xlu0 %v1130, 32
    %v1133 = vpop.permute.xlu0 %1132
    %v1135 = vadd.f32 %v1124, %v1133
    %s1136 = scalar_lea.vmem [#allocation2], 80
    %v1137 = vld [vmem:[%s1136] sm:$0xff]
    %1139 = vrot.lane.b32.xlu0 %v1135, 64
    %v1140 = vpop.permute.xlu0 %1139
    %v1141 = vsel %vm123, %v1140, 0
    %1143 = vmatpush.msra.mxu0 0.0
    %1144 = vmatpush.msra.mxu0 0.0
    %1145 = vmatpush.msra.mxu0 0.0
    %1146 = vmatpush.msra.mxu0 0.0
    %1147 = vmatpush.msra.mxu0 0.0
    %1148 = vmatpush.msra.mxu0 0.0
    %1149 = vmatpush.msra.mxu0 0.0
    %1150 = vmatpush.msra.mxu0 0.0
    %1151 = vmatpush.msra.mxu0 0.0
    %1152 = vmatpush.msra.mxu0 0.0
    %1153 = vmatpush.msra.mxu0 0.0
    %1154 = vmatpush.msra.mxu0 0.0
    %1155 = vmatpush.msra.mxu0 %v432
    %1156 = vmatpush.msra.mxu0 %v431
    %1157 = vmatpush.msra.mxu0 %v430
    %1158 = vmatpush.msra.mxu0 %v429
    %1159 = vmatmul.f32.gmra.mxu0 %v1141
    %v1160 = vpop.f32.mrf.mxu0
    %v1161 = vadd.f32 0.0, %v1160
    %1162 = vdwg.mxu0
    %v1163 = vadd.f32 %v1137, %v1161
    %v1164 = vxor.u32 %v1163, 2147483648
    %v1165 = vmul.f32 %v1164, 1.442695
    %v1166 = vpow.pop %v1165
    %v1167 = vadd.f32 %v1166, 1.0
    %v1168 = vrcp.pop %v1167
    %v1169 = vmul.f32 %v1167, %v1168
    %v1170 = vsub.f32 1.0, %v1169
    %v1171 = vmul.f32 %v1168, %v1170
    %v1172 = vadd.f32 %v1168, %v1171
    %vm1173 = vweird.f32 %v1167
    %vm1174 = vweird.f32 %v1168
    %vm1175 = vmor %vm1173, %vm1174
    %v1176 = vsel %vm1175, %v1168, %v1172
    %v1177 = vand.u32 2147483647, %v1167
    %vm1178 = vcmp.eq.f32.partialorder %v1177, 8.507059e+37
    %v1179 = vand.u32 %v1167, 2147483648
    %v1180 = vor.u32 1.1754944e-38, %v1179
    %v1181 = vsel %vm1178, %v1180, %v1176
    %v1182 = vmul.f32 1.0, %v1181
    %v1183 = vadd.f32 %v1161, %v481
    %1185 = vrot.lane.b32.xlu0 %v1183, 64
    %v1186 = vpop.permute.xlu0 %1185
    %v1188 = vmul.f32 %v1182, %v1186
    %1190 = vrot.lane.b32.xlu0 %v1188, 64
    %v1191 = vpop.permute.xlu0 %1190
    %v1193 = vadd.f32 %v1137, %v1191
    %v1194 = vtanh.pop %v1193
    %v1195 = vsub.f32 %v1135, %v1194
    %1197 = vrot.lane.b32.xlu0 %v1195, 96
    %v1198 = vpop.permute.xlu0 %1197
    %v1200 = vmul.f32 %v1182, %v1198
    %1202 = vrot.lane.b32.xlu0 %v1200, 32
    %v1203 = vpop.permute.xlu0 %1202
    %v1205 = vadd.f32 %v1194, %v1203
    %s1206 = scalar_lea.vmem [#allocation2], 88
    %v1207 = vld [vmem:[%s1206] sm:$0xff]
    %1209 = vrot.lane.b32.xlu0 %v1205, 64
    %v1210 = vpop.permute.xlu0 %1209
    %v1211 = vsel %vm123, %v1210, 0
    %1213 = vmatpush.msra.mxu0 0.0
    %1214 = vmatpush.msra.mxu0 0.0
    %1215 = vmatpush.msra.mxu0 0.0
    %1216 = vmatpush.msra.mxu0 0.0
    %1217 = vmatpush.msra.mxu0 0.0
    %1218 = vmatpush.msra.mxu0 0.0
    %1219 = vmatpush.msra.mxu0 0.0
    %1220 = vmatpush.msra.mxu0 0.0
    %1221 = vmatpush.msra.mxu0 0.0
    %1222 = vmatpush.msra.mxu0 0.0
    %1223 = vmatpush.msra.mxu0 0.0
    %1224 = vmatpush.msra.mxu0 0.0
    %1225 = vmatpush.msra.mxu0 %v432
    %1226 = vmatpush.msra.mxu0 %v431
    %1227 = vmatpush.msra.mxu0 %v430
    %1228 = vmatpush.msra.mxu0 %v429
    %1229 = vmatmul.f32.gmra.mxu0 %v1211
    %v1230 = vpop.f32.mrf.mxu0
    %v1231 = vadd.f32 0.0, %v1230
    %1232 = vdwg.mxu0
    %v1233 = vadd.f32 %v1207, %v1231
    %v1234 = vxor.u32 %v1233, 2147483648
    %v1235 = vmul.f32 %v1234, 1.442695
    %v1236 = vpow.pop %v1235
    %v1237 = vadd.f32 %v1236, 1.0
    %v1238 = vrcp.pop %v1237
    %v1239 = vmul.f32 %v1237, %v1238
    %v1240 = vsub.f32 1.0, %v1239
    %v1241 = vmul.f32 %v1238, %v1240
    %v1242 = vadd.f32 %v1238, %v1241
    %vm1243 = vweird.f32 %v1237
    %vm1244 = vweird.f32 %v1238
    %vm1245 = vmor %vm1243, %vm1244
    %v1246 = vsel %vm1245, %v1238, %v1242
    %v1247 = vand.u32 2147483647, %v1237
    %vm1248 = vcmp.eq.f32.partialorder %v1247, 8.507059e+37
    %v1249 = vand.u32 %v1237, 2147483648
    %v1250 = vor.u32 1.1754944e-38, %v1249
    %v1251 = vsel %vm1248, %v1250, %v1246
    %v1252 = vmul.f32 1.0, %v1251
    %v1253 = vadd.f32 %v1231, %v481
    %1255 = vrot.lane.b32.xlu0 %v1253, 64
    %v1256 = vpop.permute.xlu0 %1255
    %v1258 = vmul.f32 %v1252, %v1256
    %1260 = vrot.lane.b32.xlu0 %v1258, 64
    %v1261 = vpop.permute.xlu0 %1260
    %v1263 = vadd.f32 %v1207, %v1261
    %v1264 = vtanh.pop %v1263
    %v1265 = vsub.f32 %v1205, %v1264
    %1267 = vrot.lane.b32.xlu0 %v1265, 96
    %v1268 = vpop.permute.xlu0 %1267
    %v1270 = vmul.f32 %v1252, %v1268
    %1272 = vrot.lane.b32.xlu0 %v1270, 32
    %v1273 = vpop.permute.xlu0 %1272
    %v1275 = vadd.f32 %v1264, %v1273
    %s1276 = scalar_lea.vmem [#allocation2], 96
    %v1277 = vld [vmem:[%s1276] sm:$0xff]
    %1279 = vrot.lane.b32.xlu0 %v1275, 64
    %v1280 = vpop.permute.xlu0 %1279
    %v1281 = vsel %vm123, %v1280, 0
    %1283 = vmatpush.msra.mxu0 0.0
    %1284 = vmatpush.msra.mxu0 0.0
    %1285 = vmatpush.msra.mxu0 0.0
    %1286 = vmatpush.msra.mxu0 0.0
    %1287 = vmatpush.msra.mxu0 0.0
    %1288 = vmatpush.msra.mxu0 0.0
    %1289 = vmatpush.msra.mxu0 0.0
    %1290 = vmatpush.msra.mxu0 0.0
    %1291 = vmatpush.msra.mxu0 0.0
    %1292 = vmatpush.msra.mxu0 0.0
    %1293 = vmatpush.msra.mxu0 0.0
    %1294 = vmatpush.msra.mxu0 0.0
    %1295 = vmatpush.msra.mxu0 %v432
    %1296 = vmatpush.msra.mxu0 %v431
    %1297 = vmatpush.msra.mxu0 %v430
    %1298 = vmatpush.msra.mxu0 %v429
    %1299 = vmatmul.f32.gmra.mxu0 %v1281
    %v1300 = vpop.f32.mrf.mxu0
    %v1301 = vadd.f32 0.0, %v1300
    %1302 = vdwg.mxu0
    %v1303 = vadd.f32 %v1277, %v1301
    %v1304 = vxor.u32 %v1303, 2147483648
    %v1305 = vmul.f32 %v1304, 1.442695
    %v1306 = vpow.pop %v1305
    %v1307 = vadd.f32 %v1306, 1.0
    %v1308 = vrcp.pop %v1307
    %v1309 = vmul.f32 %v1307, %v1308
    %v1310 = vsub.f32 1.0, %v1309
    %v1311 = vmul.f32 %v1308, %v1310
    %v1312 = vadd.f32 %v1308, %v1311
    %vm1313 = vweird.f32 %v1307
    %vm1314 = vweird.f32 %v1308
    %vm1315 = vmor %vm1313, %vm1314
    %v1316 = vsel %vm1315, %v1308, %v1312
    %v1317 = vand.u32 2147483647, %v1307
    %vm1318 = vcmp.eq.f32.partialorder %v1317, 8.507059e+37
    %v1319 = vand.u32 %v1307, 2147483648
    %v1320 = vor.u32 1.1754944e-38, %v1319
    %v1321 = vsel %vm1318, %v1320, %v1316
    %v1322 = vmul.f32 1.0, %v1321
    %v1323 = vadd.f32 %v1301, %v481
    %1325 = vrot.lane.b32.xlu0 %v1323, 64
    %v1326 = vpop.permute.xlu0 %1325
    %v1328 = vmul.f32 %v1322, %v1326
    %1330 = vrot.lane.b32.xlu0 %v1328, 64
    %v1331 = vpop.permute.xlu0 %1330
    %v1333 = vadd.f32 %v1277, %v1331
    %v1334 = vtanh.pop %v1333
    %v1335 = vsub.f32 %v1275, %v1334
    %1337 = vrot.lane.b32.xlu0 %v1335, 96
    %v1338 = vpop.permute.xlu0 %1337
    %v1340 = vmul.f32 %v1322, %v1338
    %1342 = vrot.lane.b32.xlu0 %v1340, 32
    %v1343 = vpop.permute.xlu0 %1342
    %v1345 = vadd.f32 %v1334, %v1343
    %s1346 = scalar_lea.vmem [#allocation2], 104
    %v1347 = vld [vmem:[%s1346] sm:$0xff]
    %1349 = vrot.lane.b32.xlu0 %v1345, 64
    %v1350 = vpop.permute.xlu0 %1349
    %v1351 = vsel %vm123, %v1350, 0
    %1353 = vmatpush.msra.mxu0 0.0
    %1354 = vmatpush.msra.mxu0 0.0
    %1355 = vmatpush.msra.mxu0 0.0
    %1356 = vmatpush.msra.mxu0 0.0
    %1357 = vmatpush.msra.mxu0 0.0
    %1358 = vmatpush.msra.mxu0 0.0
    %1359 = vmatpush.msra.mxu0 0.0
    %1360 = vmatpush.msra.mxu0 0.0
    %1361 = vmatpush.msra.mxu0 0.0
    %1362 = vmatpush.msra.mxu0 0.0
    %1363 = vmatpush.msra.mxu0 0.0
    %1364 = vmatpush.msra.mxu0 0.0
    %1365 = vmatpush.msra.mxu0 %v432
    %1366 = vmatpush.msra.mxu0 %v431
    %1367 = vmatpush.msra.mxu0 %v430
    %1368 = vmatpush.msra.mxu0 %v429
    %1369 = vmatmul.f32.gmra.mxu0 %v1351
    %v1370 = vpop.f32.mrf.mxu0
    %v1371 = vadd.f32 0.0, %v1370
    %1372 = vdwg.mxu0
    %v1373 = vadd.f32 %v1347, %v1371
    %v1374 = vxor.u32 %v1373, 2147483648
    %v1375 = vmul.f32 %v1374, 1.442695
    %v1376 = vpow.pop %v1375
    %v1377 = vadd.f32 %v1376, 1.0
    %v1378 = vrcp.pop %v1377
    %v1379 = vmul.f32 %v1377, %v1378
    %v1380 = vsub.f32 1.0, %v1379
    %v1381 = vmul.f32 %v1378, %v1380
    %v1382 = vadd.f32 %v1378, %v1381
    %vm1383 = vweird.f32 %v1377
    %vm1384 = vweird.f32 %v1378
    %vm1385 = vmor %vm1383, %vm1384
    %v1386 = vsel %vm1385, %v1378, %v1382
    %v1387 = vand.u32 2147483647, %v1377
    %vm1388 = vcmp.eq.f32.partialorder %v1387, 8.507059e+37
    %v1389 = vand.u32 %v1377, 2147483648
    %v1390 = vor.u32 1.1754944e-38, %v1389
    %v1391 = vsel %vm1388, %v1390, %v1386
    %v1392 = vmul.f32 1.0, %v1391
    %v1393 = vadd.f32 %v1371, %v481
    %1395 = vrot.lane.b32.xlu0 %v1393, 64
    %v1396 = vpop.permute.xlu0 %1395
    %v1398 = vmul.f32 %v1392, %v1396
    %1400 = vrot.lane.b32.xlu0 %v1398, 64
    %v1401 = vpop.permute.xlu0 %1400
    %v1403 = vadd.f32 %v1347, %v1401
    %v1404 = vtanh.pop %v1403
    %v1405 = vsub.f32 %v1345, %v1404
    %1407 = vrot.lane.b32.xlu0 %v1405, 96
    %v1408 = vpop.permute.xlu0 %1407
    %v1410 = vmul.f32 %v1392, %v1408
    %1412 = vrot.lane.b32.xlu0 %v1410, 32
    %v1413 = vpop.permute.xlu0 %1412
    %v1415 = vadd.f32 %v1404, %v1413
    %s1416 = scalar_lea.vmem [#allocation2], 112
    %v1417 = vld [vmem:[%s1416] sm:$0xff]
    %1419 = vrot.lane.b32.xlu0 %v1415, 64
    %v1420 = vpop.permute.xlu0 %1419
    %v1421 = vsel %vm123, %v1420, 0
    %1423 = vmatpush.msra.mxu0 0.0
    %1424 = vmatpush.msra.mxu0 0.0
    %1425 = vmatpush.msra.mxu0 0.0
    %1426 = vmatpush.msra.mxu0 0.0
    %1427 = vmatpush.msra.mxu0 0.0
    %1428 = vmatpush.msra.mxu0 0.0
    %1429 = vmatpush.msra.mxu0 0.0
    %1430 = vmatpush.msra.mxu0 0.0
    %1431 = vmatpush.msra.mxu0 0.0
    %1432 = vmatpush.msra.mxu0 0.0
    %1433 = vmatpush.msra.mxu0 0.0
    %1434 = vmatpush.msra.mxu0 0.0
    %1435 = vmatpush.msra.mxu0 %v432
    %1436 = vmatpush.msra.mxu0 %v431
    %1437 = vmatpush.msra.mxu0 %v430
    %1438 = vmatpush.msra.mxu0 %v429
    %1439 = vmatmul.f32.gmra.mxu0 %v1421
    %v1440 = vpop.f32.mrf.mxu0
    %v1441 = vadd.f32 0.0, %v1440
    %1442 = vdwg.mxu0
    %v1443 = vadd.f32 %v1417, %v1441
    %v1444 = vxor.u32 %v1443, 2147483648
    %v1445 = vmul.f32 %v1444, 1.442695
    %v1446 = vpow.pop %v1445
    %v1447 = vadd.f32 %v1446, 1.0
    %v1448 = vrcp.pop %v1447
    %v1449 = vmul.f32 %v1447, %v1448
    %v1450 = vsub.f32 1.0, %v1449
    %v1451 = vmul.f32 %v1448, %v1450
    %v1452 = vadd.f32 %v1448, %v1451
    %vm1453 = vweird.f32 %v1447
    %vm1454 = vweird.f32 %v1448
    %vm1455 = vmor %vm1453, %vm1454
    %v1456 = vsel %vm1455, %v1448, %v1452
    %v1457 = vand.u32 2147483647, %v1447
    %vm1458 = vcmp.eq.f32.partialorder %v1457, 8.507059e+37
    %v1459 = vand.u32 %v1447, 2147483648
    %v1460 = vor.u32 1.1754944e-38, %v1459
    %v1461 = vsel %vm1458, %v1460, %v1456
    %v1462 = vmul.f32 1.0, %v1461
    %v1463 = vadd.f32 %v1441, %v481
    %1465 = vrot.lane.b32.xlu0 %v1463, 64
    %v1466 = vpop.permute.xlu0 %1465
    %v1468 = vmul.f32 %v1462, %v1466
    %1470 = vrot.lane.b32.xlu0 %v1468, 64
    %v1471 = vpop.permute.xlu0 %1470
    %v1473 = vadd.f32 %v1417, %v1471
    %v1474 = vtanh.pop %v1473
    %v1475 = vsub.f32 %v1415, %v1474
    %1477 = vrot.lane.b32.xlu0 %v1475, 96
    %v1478 = vpop.permute.xlu0 %1477
    %v1480 = vmul.f32 %v1462, %v1478
    %1482 = vrot.lane.b32.xlu0 %v1480, 32
    %v1483 = vpop.permute.xlu0 %1482
    %v1485 = vadd.f32 %v1474, %v1483
    %s1486 = scalar_lea.vmem [#allocation2], 120
    %v1487 = vld [vmem:[%s1486] sm:$0xff]
    %1489 = vrot.lane.b32.xlu0 %v1485, 64
    %v1490 = vpop.permute.xlu0 %1489
    %v1491 = vsel %vm123, %v1490, 0
    %1493 = vmatpush.msra.mxu0 0.0
    %1494 = vmatpush.msra.mxu0 0.0
    %1495 = vmatpush.msra.mxu0 0.0
    %1496 = vmatpush.msra.mxu0 0.0
    %1497 = vmatpush.msra.mxu0 0.0
    %1498 = vmatpush.msra.mxu0 0.0
    %1499 = vmatpush.msra.mxu0 0.0
    %1500 = vmatpush.msra.mxu0 0.0
    %1501 = vmatpush.msra.mxu0 0.0
    %1502 = vmatpush.msra.mxu0 0.0
    %1503 = vmatpush.msra.mxu0 0.0
    %1504 = vmatpush.msra.mxu0 0.0
    %1505 = vmatpush.msra.mxu0 %v432
    %1506 = vmatpush.msra.mxu0 %v431
    %1507 = vmatpush.msra.mxu0 %v430
    %1508 = vmatpush.msra.mxu0 %v429
    %1509 = vmatmul.f32.gmra.mxu0 %v1491
    %v1510 = vpop.f32.mrf.mxu0
    %v1511 = vadd.f32 0.0, %v1510
    %1512 = vdwg.mxu0
    %v1513 = vadd.f32 %v1487, %v1511
    %v1514 = vxor.u32 %v1513, 2147483648
    %v1515 = vmul.f32 %v1514, 1.442695
    %v1516 = vpow.pop %v1515
    %v1517 = vadd.f32 %v1516, 1.0
    %v1518 = vrcp.pop %v1517
    %v1519 = vmul.f32 %v1517, %v1518
    %v1520 = vsub.f32 1.0, %v1519
    %v1521 = vmul.f32 %v1518, %v1520
    %v1522 = vadd.f32 %v1518, %v1521
    %vm1523 = vweird.f32 %v1517
    %vm1524 = vweird.f32 %v1518
    %vm1525 = vmor %vm1523, %vm1524
    %v1526 = vsel %vm1525, %v1518, %v1522
    %v1527 = vand.u32 2147483647, %v1517
    %vm1528 = vcmp.eq.f32.partialorder %v1527, 8.507059e+37
    %v1529 = vand.u32 %v1517, 2147483648
    %v1530 = vor.u32 1.1754944e-38, %v1529
    %v1531 = vsel %vm1528, %v1530, %v1526
    %v1532 = vmul.f32 1.0, %v1531
    %v1533 = vadd.f32 %v1511, %v481
    %1535 = vrot.lane.b32.xlu0 %v1533, 64
    %v1536 = vpop.permute.xlu0 %1535
    %v1538 = vmul.f32 %v1532, %v1536
    %1540 = vrot.lane.b32.xlu0 %v1538, 64
    %v1541 = vpop.permute.xlu0 %1540
    %v1543 = vadd.f32 %v1487, %v1541
    %v1544 = vtanh.pop %v1543
    %v1545 = vsub.f32 %v1485, %v1544
    %1547 = vrot.lane.b32.xlu0 %v1545, 96
    %v1548 = vpop.permute.xlu0 %1547
    %v1550 = vmul.f32 %v1532, %v1548
    %1552 = vrot.lane.b32.xlu0 %v1550, 32
    %v1553 = vpop.permute.xlu0 %1552
    %v1555 = vadd.f32 %v1544, %v1553
    %s1556 = scalar_lea.vmem [#allocation2], 128
    %v1557 = vld [vmem:[%s1556] sm:$0xff]
    %1559 = vrot.lane.b32.xlu0 %v1555, 64
    %v1560 = vpop.permute.xlu0 %1559
    %v1561 = vsel %vm123, %v1560, 0
    %1563 = vmatpush.msra.mxu0 0.0
    %1564 = vmatpush.msra.mxu0 0.0
    %1565 = vmatpush.msra.mxu0 0.0
    %1566 = vmatpush.msra.mxu0 0.0
    %1567 = vmatpush.msra.mxu0 0.0
    %1568 = vmatpush.msra.mxu0 0.0
    %1569 = vmatpush.msra.mxu0 0.0
    %1570 = vmatpush.msra.mxu0 0.0
    %1571 = vmatpush.msra.mxu0 0.0
    %1572 = vmatpush.msra.mxu0 0.0
    %1573 = vmatpush.msra.mxu0 0.0
    %1574 = vmatpush.msra.mxu0 0.0
    %1575 = vmatpush.msra.mxu0 %v432
    %1576 = vmatpush.msra.mxu0 %v431
    %1577 = vmatpush.msra.mxu0 %v430
    %1578 = vmatpush.msra.mxu0 %v429
    %1579 = vmatmul.f32.gmra.mxu0 %v1561
    %v1580 = vpop.f32.mrf.mxu0
    %v1581 = vadd.f32 0.0, %v1580
    %1582 = vdwg.mxu0
    %v1583 = vadd.f32 %v1557, %v1581
    %v1584 = vxor.u32 %v1583, 2147483648
    %v1585 = vmul.f32 %v1584, 1.442695
    %v1586 = vpow.pop %v1585
    %v1587 = vadd.f32 %v1586, 1.0
    %v1588 = vrcp.pop %v1587
    %v1589 = vmul.f32 %v1587, %v1588
    %v1590 = vsub.f32 1.0, %v1589
    %v1591 = vmul.f32 %v1588, %v1590
    %v1592 = vadd.f32 %v1588, %v1591
    %vm1593 = vweird.f32 %v1587
    %vm1594 = vweird.f32 %v1588
    %vm1595 = vmor %vm1593, %vm1594
    %v1596 = vsel %vm1595, %v1588, %v1592
    %v1597 = vand.u32 2147483647, %v1587
    %vm1598 = vcmp.eq.f32.partialorder %v1597, 8.507059e+37
    %v1599 = vand.u32 %v1587, 2147483648
    %v1600 = vor.u32 1.1754944e-38, %v1599
    %v1601 = vsel %vm1598, %v1600, %v1596
    %v1602 = vmul.f32 1.0, %v1601
    %v1603 = vadd.f32 %v1581, %v481
    %1605 = vrot.lane.b32.xlu0 %v1603, 64
    %v1606 = vpop.permute.xlu0 %1605
    %v1608 = vmul.f32 %v1602, %v1606
    %1610 = vrot.lane.b32.xlu0 %v1608, 64
    %v1611 = vpop.permute.xlu0 %1610
    %v1613 = vadd.f32 %v1557, %v1611
    %v1614 = vtanh.pop %v1613
    %v1615 = vsub.f32 %v1555, %v1614
    %1617 = vrot.lane.b32.xlu0 %v1615, 96
    %v1618 = vpop.permute.xlu0 %1617
    %v1620 = vmul.f32 %v1602, %v1618
    %1622 = vrot.lane.b32.xlu0 %v1620, 32
    %v1623 = vpop.permute.xlu0 %1622
    %v1625 = vadd.f32 %v1614, %v1623
    %s1626 = scalar_lea.vmem [#allocation2], 136
    %v1627 = vld [vmem:[%s1626] sm:$0xff]
    %1629 = vrot.lane.b32.xlu0 %v1625, 64
    %v1630 = vpop.permute.xlu0 %1629
    %v1631 = vsel %vm123, %v1630, 0
    %1633 = vmatpush.msra.mxu0 0.0
    %1634 = vmatpush.msra.mxu0 0.0
    %1635 = vmatpush.msra.mxu0 0.0
    %1636 = vmatpush.msra.mxu0 0.0
    %1637 = vmatpush.msra.mxu0 0.0
    %1638 = vmatpush.msra.mxu0 0.0
    %1639 = vmatpush.msra.mxu0 0.0
    %1640 = vmatpush.msra.mxu0 0.0
    %1641 = vmatpush.msra.mxu0 0.0
    %1642 = vmatpush.msra.mxu0 0.0
    %1643 = vmatpush.msra.mxu0 0.0
    %1644 = vmatpush.msra.mxu0 0.0
    %1645 = vmatpush.msra.mxu0 %v432
    %1646 = vmatpush.msra.mxu0 %v431
    %1647 = vmatpush.msra.mxu0 %v430
    %1648 = vmatpush.msra.mxu0 %v429
    %1649 = vmatmul.f32.gmra.mxu0 %v1631
    %v1650 = vpop.f32.mrf.mxu0
    %v1651 = vadd.f32 0.0, %v1650
    %1652 = vdwg.mxu0
    %v1653 = vadd.f32 %v1627, %v1651
    %v1654 = vxor.u32 %v1653, 2147483648
    %v1655 = vmul.f32 %v1654, 1.442695
    %v1656 = vpow.pop %v1655
    %v1657 = vadd.f32 %v1656, 1.0
    %v1658 = vrcp.pop %v1657
    %v1659 = vmul.f32 %v1657, %v1658
    %v1660 = vsub.f32 1.0, %v1659
    %v1661 = vmul.f32 %v1658, %v1660
    %v1662 = vadd.f32 %v1658, %v1661
    %vm1663 = vweird.f32 %v1657
    %vm1664 = vweird.f32 %v1658
    %vm1665 = vmor %vm1663, %vm1664
    %v1666 = vsel %vm1665, %v1658, %v1662
    %v1667 = vand.u32 2147483647, %v1657
    %vm1668 = vcmp.eq.f32.partialorder %v1667, 8.507059e+37
    %v1669 = vand.u32 %v1657, 2147483648
    %v1670 = vor.u32 1.1754944e-38, %v1669
    %v1671 = vsel %vm1668, %v1670, %v1666
    %v1672 = vmul.f32 1.0, %v1671
    %v1673 = vadd.f32 %v1651, %v481
    %1675 = vrot.lane.b32.xlu0 %v1673, 64
    %v1676 = vpop.permute.xlu0 %1675
    %v1678 = vmul.f32 %v1672, %v1676
    %1680 = vrot.lane.b32.xlu0 %v1678, 64
    %v1681 = vpop.permute.xlu0 %1680
    %v1683 = vadd.f32 %v1627, %v1681
    %v1684 = vtanh.pop %v1683
    %v1685 = vsub.f32 %v1625, %v1684
    %1687 = vrot.lane.b32.xlu0 %v1685, 96
    %v1688 = vpop.permute.xlu0 %1687
    %v1690 = vmul.f32 %v1672, %v1688
    %1692 = vrot.lane.b32.xlu0 %v1690, 32
    %v1693 = vpop.permute.xlu0 %1692
    %v1695 = vadd.f32 %v1684, %v1693
    %s1696 = scalar_lea.vmem [#allocation2], 144
    %v1697 = vld [vmem:[%s1696] sm:$0xff]
    %1699 = vrot.lane.b32.xlu0 %v1695, 64
    %v1700 = vpop.permute.xlu0 %1699
    %v1701 = vsel %vm123, %v1700, 0
    %1703 = vmatpush.msra.mxu0 0.0
    %1704 = vmatpush.msra.mxu0 0.0
    %1705 = vmatpush.msra.mxu0 0.0
    %1706 = vmatpush.msra.mxu0 0.0
    %1707 = vmatpush.msra.mxu0 0.0
    %1708 = vmatpush.msra.mxu0 0.0
    %1709 = vmatpush.msra.mxu0 0.0
    %1710 = vmatpush.msra.mxu0 0.0
    %1711 = vmatpush.msra.mxu0 0.0
    %1712 = vmatpush.msra.mxu0 0.0
    %1713 = vmatpush.msra.mxu0 0.0
    %1714 = vmatpush.msra.mxu0 0.0
    %1715 = vmatpush.msra.mxu0 %v432
    %1716 = vmatpush.msra.mxu0 %v431
    %1717 = vmatpush.msra.mxu0 %v430
    %1718 = vmatpush.msra.mxu0 %v429
    %1719 = vmatmul.f32.gmra.mxu0 %v1701
    %v1720 = vpop.f32.mrf.mxu0
    %v1721 = vadd.f32 0.0, %v1720
    %1722 = vdwg.mxu0
    %v1723 = vadd.f32 %v1697, %v1721
    %v1724 = vxor.u32 %v1723, 2147483648
    %v1725 = vmul.f32 %v1724, 1.442695
    %v1726 = vpow.pop %v1725
    %v1727 = vadd.f32 %v1726, 1.0
    %v1728 = vrcp.pop %v1727
    %v1729 = vmul.f32 %v1727, %v1728
    %v1730 = vsub.f32 1.0, %v1729
    %v1731 = vmul.f32 %v1728, %v1730
    %v1732 = vadd.f32 %v1728, %v1731
    %vm1733 = vweird.f32 %v1727
    %vm1734 = vweird.f32 %v1728
    %vm1735 = vmor %vm1733, %vm1734
    %v1736 = vsel %vm1735, %v1728, %v1732
    %v1737 = vand.u32 2147483647, %v1727
    %vm1738 = vcmp.eq.f32.partialorder %v1737, 8.507059e+37
    %v1739 = vand.u32 %v1727, 2147483648
    %v1740 = vor.u32 1.1754944e-38, %v1739
    %v1741 = vsel %vm1738, %v1740, %v1736
    %v1742 = vmul.f32 1.0, %v1741
    %v1743 = vadd.f32 %v1721, %v481
    %1745 = vrot.lane.b32.xlu0 %v1743, 64
    %v1746 = vpop.permute.xlu0 %1745
    %v1748 = vmul.f32 %v1742, %v1746
    %1750 = vrot.lane.b32.xlu0 %v1748, 64
    %v1751 = vpop.permute.xlu0 %1750
    %v1753 = vadd.f32 %v1697, %v1751
    %v1754 = vtanh.pop %v1753
    %v1755 = vsub.f32 %v1695, %v1754
    %1757 = vrot.lane.b32.xlu0 %v1755, 96
    %v1758 = vpop.permute.xlu0 %1757
    %v1760 = vmul.f32 %v1742, %v1758
    %1762 = vrot.lane.b32.xlu0 %v1760, 32
    %v1763 = vpop.permute.xlu0 %1762
    %v1765 = vadd.f32 %v1754, %v1763
    %s1766 = scalar_lea.vmem [#allocation2], 152
    %v1767 = vld [vmem:[%s1766] sm:$0xff]
    %1769 = vrot.lane.b32.xlu0 %v1765, 64
    %v1770 = vpop.permute.xlu0 %1769
    %v1771 = vsel %vm123, %v1770, 0
    %1773 = vmatpush.msra.mxu0 0.0
    %1774 = vmatpush.msra.mxu0 0.0
    %1775 = vmatpush.msra.mxu0 0.0
    %1776 = vmatpush.msra.mxu0 0.0
    %1777 = vmatpush.msra.mxu0 0.0
    %1778 = vmatpush.msra.mxu0 0.0
    %1779 = vmatpush.msra.mxu0 0.0
    %1780 = vmatpush.msra.mxu0 0.0
    %1781 = vmatpush.msra.mxu0 0.0
    %1782 = vmatpush.msra.mxu0 0.0
    %1783 = vmatpush.msra.mxu0 0.0
    %1784 = vmatpush.msra.mxu0 0.0
    %1785 = vmatpush.msra.mxu0 %v432
    %1786 = vmatpush.msra.mxu0 %v431
    %1787 = vmatpush.msra.mxu0 %v430
    %1788 = vmatpush.msra.mxu0 %v429
    %1789 = vmatmul.f32.gmra.mxu0 %v1771
    %v1790 = vpop.f32.mrf.mxu0
    %v1791 = vadd.f32 0.0, %v1790
    %1792 = vdwg.mxu0
    %v1793 = vadd.f32 %v1767, %v1791
    %v1794 = vxor.u32 %v1793, 2147483648
    %v1795 = vmul.f32 %v1794, 1.442695
    %v1796 = vpow.pop %v1795
    %v1797 = vadd.f32 %v1796, 1.0
    %v1798 = vrcp.pop %v1797
    %v1799 = vmul.f32 %v1797, %v1798
    %v1800 = vsub.f32 1.0, %v1799
    %v1801 = vmul.f32 %v1798, %v1800
    %v1802 = vadd.f32 %v1798, %v1801
    %vm1803 = vweird.f32 %v1797
    %vm1804 = vweird.f32 %v1798
    %vm1805 = vmor %vm1803, %vm1804
    %v1806 = vsel %vm1805, %v1798, %v1802
    %v1807 = vand.u32 2147483647, %v1797
    %vm1808 = vcmp.eq.f32.partialorder %v1807, 8.507059e+37
    %v1809 = vand.u32 %v1797, 2147483648
    %v1810 = vor.u32 1.1754944e-38, %v1809
    %v1811 = vsel %vm1808, %v1810, %v1806
    %v1812 = vmul.f32 1.0, %v1811
    %v1813 = vadd.f32 %v1791, %v481
    %1815 = vrot.lane.b32.xlu0 %v1813, 64
    %v1816 = vpop.permute.xlu0 %1815
    %v1818 = vmul.f32 %v1812, %v1816
    %1820 = vrot.lane.b32.xlu0 %v1818, 64
    %v1821 = vpop.permute.xlu0 %1820
    %v1823 = vadd.f32 %v1767, %v1821
    %v1824 = vtanh.pop %v1823
    %v1825 = vsub.f32 %v1765, %v1824
    %1827 = vrot.lane.b32.xlu0 %v1825, 96
    %v1828 = vpop.permute.xlu0 %1827
    %v1830 = vmul.f32 %v1812, %v1828
    %1832 = vrot.lane.b32.xlu0 %v1830, 32
    %v1833 = vpop.permute.xlu0 %1832
    %v1835 = vadd.f32 %v1824, %v1833
    %s1836 = scalar_lea.vmem [#allocation2], 160
    %v1837 = vld [vmem:[%s1836] sm:$0xff]
    %1839 = vrot.lane.b32.xlu0 %v1835, 64
    %v1840 = vpop.permute.xlu0 %1839
    %v1841 = vsel %vm123, %v1840, 0
    %1843 = vmatpush.msra.mxu0 0.0
    %1844 = vmatpush.msra.mxu0 0.0
    %1845 = vmatpush.msra.mxu0 0.0
    %1846 = vmatpush.msra.mxu0 0.0
    %1847 = vmatpush.msra.mxu0 0.0
    %1848 = vmatpush.msra.mxu0 0.0
    %1849 = vmatpush.msra.mxu0 0.0
    %1850 = vmatpush.msra.mxu0 0.0
    %1851 = vmatpush.msra.mxu0 0.0
    %1852 = vmatpush.msra.mxu0 0.0
    %1853 = vmatpush.msra.mxu0 0.0
    %1854 = vmatpush.msra.mxu0 0.0
    %1855 = vmatpush.msra.mxu0 %v432
    %1856 = vmatpush.msra.mxu0 %v431
    %1857 = vmatpush.msra.mxu0 %v430
    %1858 = vmatpush.msra.mxu0 %v429
    %1859 = vmatmul.f32.gmra.mxu0 %v1841
    %v1860 = vpop.f32.mrf.mxu0
    %v1861 = vadd.f32 0.0, %v1860
    %1862 = vdwg.mxu0
    %v1863 = vadd.f32 %v1837, %v1861
    %v1864 = vxor.u32 %v1863, 2147483648
    %v1865 = vmul.f32 %v1864, 1.442695
    %v1866 = vpow.pop %v1865
    %v1867 = vadd.f32 %v1866, 1.0
    %v1868 = vrcp.pop %v1867
    %v1869 = vmul.f32 %v1867, %v1868
    %v1870 = vsub.f32 1.0, %v1869
    %v1871 = vmul.f32 %v1868, %v1870
    %v1872 = vadd.f32 %v1868, %v1871
    %vm1873 = vweird.f32 %v1867
    %vm1874 = vweird.f32 %v1868
    %vm1875 = vmor %vm1873, %vm1874
    %v1876 = vsel %vm1875, %v1868, %v1872
    %v1877 = vand.u32 2147483647, %v1867
    %vm1878 = vcmp.eq.f32.partialorder %v1877, 8.507059e+37
    %v1879 = vand.u32 %v1867, 2147483648
    %v1880 = vor.u32 1.1754944e-38, %v1879
    %v1881 = vsel %vm1878, %v1880, %v1876
    %v1882 = vmul.f32 1.0, %v1881
    %v1883 = vadd.f32 %v1861, %v481
    %1885 = vrot.lane.b32.xlu0 %v1883, 64
    %v1886 = vpop.permute.xlu0 %1885
    %v1888 = vmul.f32 %v1882, %v1886
    %1890 = vrot.lane.b32.xlu0 %v1888, 64
    %v1891 = vpop.permute.xlu0 %1890
    %v1893 = vadd.f32 %v1837, %v1891
    %v1894 = vtanh.pop %v1893
    %v1895 = vsub.f32 %v1835, %v1894
    %1897 = vrot.lane.b32.xlu0 %v1895, 96
    %v1898 = vpop.permute.xlu0 %1897
    %v1900 = vmul.f32 %v1882, %v1898
    %1902 = vrot.lane.b32.xlu0 %v1900, 32
    %v1903 = vpop.permute.xlu0 %1902
    %v1905 = vadd.f32 %v1894, %v1903
    %s1906 = scalar_lea.vmem [#allocation2], 168
    %v1907 = vld [vmem:[%s1906] sm:$0xff]
    %1909 = vrot.lane.b32.xlu0 %v1905, 64
    %v1910 = vpop.permute.xlu0 %1909
    %v1911 = vsel %vm123, %v1910, 0
    %1913 = vmatpush.msra.mxu0 0.0
    %1914 = vmatpush.msra.mxu0 0.0
    %1915 = vmatpush.msra.mxu0 0.0
    %1916 = vmatpush.msra.mxu0 0.0
    %1917 = vmatpush.msra.mxu0 0.0
    %1918 = vmatpush.msra.mxu0 0.0
    %1919 = vmatpush.msra.mxu0 0.0
    %1920 = vmatpush.msra.mxu0 0.0
    %1921 = vmatpush.msra.mxu0 0.0
    %1922 = vmatpush.msra.mxu0 0.0
    %1923 = vmatpush.msra.mxu0 0.0
    %1924 = vmatpush.msra.mxu0 0.0
    %1925 = vmatpush.msra.mxu0 %v432
    %1926 = vmatpush.msra.mxu0 %v431
    %1927 = vmatpush.msra.mxu0 %v430
    %1928 = vmatpush.msra.mxu0 %v429
    %1929 = vmatmul.f32.gmra.mxu0 %v1911
    %v1930 = vpop.f32.mrf.mxu0
    %v1931 = vadd.f32 0.0, %v1930
    %1932 = vdwg.mxu0
    %v1933 = vadd.f32 %v1907, %v1931
    %v1934 = vxor.u32 %v1933, 2147483648
    %v1935 = vmul.f32 %v1934, 1.442695
    %v1936 = vpow.pop %v1935
    %v1937 = vadd.f32 %v1936, 1.0
    %v1938 = vrcp.pop %v1937
    %v1939 = vmul.f32 %v1937, %v1938
    %v1940 = vsub.f32 1.0, %v1939
    %v1941 = vmul.f32 %v1938, %v1940
    %v1942 = vadd.f32 %v1938, %v1941
    %vm1943 = vweird.f32 %v1937
    %vm1944 = vweird.f32 %v1938
    %vm1945 = vmor %vm1943, %vm1944
    %v1946 = vsel %vm1945, %v1938, %v1942
    %v1947 = vand.u32 2147483647, %v1937
    %vm1948 = vcmp.eq.f32.partialorder %v1947, 8.507059e+37
    %v1949 = vand.u32 %v1937, 2147483648
    %v1950 = vor.u32 1.1754944e-38, %v1949
    %v1951 = vsel %vm1948, %v1950, %v1946
    %v1952 = vmul.f32 1.0, %v1951
    %v1953 = vadd.f32 %v1931, %v481
    %1955 = vrot.lane.b32.xlu0 %v1953, 64
    %v1956 = vpop.permute.xlu0 %1955
    %v1958 = vmul.f32 %v1952, %v1956
    %1960 = vrot.lane.b32.xlu0 %v1958, 64
    %v1961 = vpop.permute.xlu0 %1960
    %v1963 = vadd.f32 %v1907, %v1961
    %v1964 = vtanh.pop %v1963
    %v1965 = vsub.f32 %v1905, %v1964
    %1967 = vrot.lane.b32.xlu0 %v1965, 96
    %v1968 = vpop.permute.xlu0 %1967
    %v1970 = vmul.f32 %v1952, %v1968
    %1972 = vrot.lane.b32.xlu0 %v1970, 32
    %v1973 = vpop.permute.xlu0 %1972
    %v1975 = vadd.f32 %v1964, %v1973
    %s1976 = scalar_lea.vmem [#allocation2], 176
    %v1977 = vld [vmem:[%s1976] sm:$0xff]
    %1979 = vrot.lane.b32.xlu0 %v1975, 64
    %v1980 = vpop.permute.xlu0 %1979
    %v1981 = vsel %vm123, %v1980, 0
    %1983 = vmatpush.msra.mxu0 0.0
    %1984 = vmatpush.msra.mxu0 0.0
    %1985 = vmatpush.msra.mxu0 0.0
    %1986 = vmatpush.msra.mxu0 0.0
    %1987 = vmatpush.msra.mxu0 0.0
    %1988 = vmatpush.msra.mxu0 0.0
    %1989 = vmatpush.msra.mxu0 0.0
    %1990 = vmatpush.msra.mxu0 0.0
    %1991 = vmatpush.msra.mxu0 0.0
    %1992 = vmatpush.msra.mxu0 0.0
    %1993 = vmatpush.msra.mxu0 0.0
    %1994 = vmatpush.msra.mxu0 0.0
    %1995 = vmatpush.msra.mxu0 %v432
    %1996 = vmatpush.msra.mxu0 %v431
    %1997 = vmatpush.msra.mxu0 %v430
    %1998 = vmatpush.msra.mxu0 %v429
    %1999 = vmatmul.f32.gmra.mxu0 %v1981
    %v2000 = vpop.f32.mrf.mxu0
    %v2001 = vadd.f32 0.0, %v2000
    %2002 = vdwg.mxu0
    %v2003 = vadd.f32 %v1977, %v2001
    %v2004 = vxor.u32 %v2003, 2147483648
    %v2005 = vmul.f32 %v2004, 1.442695
    %v2006 = vpow.pop %v2005
    %v2007 = vadd.f32 %v2006, 1.0
    %v2008 = vrcp.pop %v2007
    %v2009 = vmul.f32 %v2007, %v2008
    %v2010 = vsub.f32 1.0, %v2009
    %v2011 = vmul.f32 %v2008, %v2010
    %v2012 = vadd.f32 %v2008, %v2011
    %vm2013 = vweird.f32 %v2007
    %vm2014 = vweird.f32 %v2008
    %vm2015 = vmor %vm2013, %vm2014
    %v2016 = vsel %vm2015, %v2008, %v2012
    %v2017 = vand.u32 2147483647, %v2007
    %vm2018 = vcmp.eq.f32.partialorder %v2017, 8.507059e+37
    %v2019 = vand.u32 %v2007, 2147483648
    %v2020 = vor.u32 1.1754944e-38, %v2019
    %v2021 = vsel %vm2018, %v2020, %v2016
    %v2022 = vmul.f32 1.0, %v2021
    %v2023 = vadd.f32 %v2001, %v481
    %2025 = vrot.lane.b32.xlu0 %v2023, 64
    %v2026 = vpop.permute.xlu0 %2025
    %v2028 = vmul.f32 %v2022, %v2026
    %2030 = vrot.lane.b32.xlu0 %v2028, 64
    %v2031 = vpop.permute.xlu0 %2030
    %v2033 = vadd.f32 %v1977, %v2031
    %v2034 = vtanh.pop %v2033
    %v2035 = vsub.f32 %v1975, %v2034
    %2037 = vrot.lane.b32.xlu0 %v2035, 96
    %v2038 = vpop.permute.xlu0 %2037
    %v2040 = vmul.f32 %v2022, %v2038
    %2042 = vrot.lane.b32.xlu0 %v2040, 32
    %v2043 = vpop.permute.xlu0 %2042
    %v2045 = vadd.f32 %v2034, %v2043
    %s2046 = scalar_lea.vmem [#allocation2], 184
    %v2047 = vld [vmem:[%s2046] sm:$0xff]
    %2049 = vrot.lane.b32.xlu0 %v2045, 64
    %v2050 = vpop.permute.xlu0 %2049
    %v2051 = vsel %vm123, %v2050, 0
    %2053 = vmatpush.msra.mxu0 0.0
    %2054 = vmatpush.msra.mxu0 0.0
    %2055 = vmatpush.msra.mxu0 0.0
    %2056 = vmatpush.msra.mxu0 0.0
    %2057 = vmatpush.msra.mxu0 0.0
    %2058 = vmatpush.msra.mxu0 0.0
    %2059 = vmatpush.msra.mxu0 0.0
    %2060 = vmatpush.msra.mxu0 0.0
    %2061 = vmatpush.msra.mxu0 0.0
    %2062 = vmatpush.msra.mxu0 0.0
    %2063 = vmatpush.msra.mxu0 0.0
    %2064 = vmatpush.msra.mxu0 0.0
    %2065 = vmatpush.msra.mxu0 %v432
    %2066 = vmatpush.msra.mxu0 %v431
    %2067 = vmatpush.msra.mxu0 %v430
    %2068 = vmatpush.msra.mxu0 %v429
    %2069 = vmatmul.f32.gmra.mxu0 %v2051
    %v2070 = vpop.f32.mrf.mxu0
    %v2071 = vadd.f32 0.0, %v2070
    %2072 = vdwg.mxu0
    %v2073 = vadd.f32 %v2047, %v2071
    %v2074 = vxor.u32 %v2073, 2147483648
    %v2075 = vmul.f32 %v2074, 1.442695
    %v2076 = vpow.pop %v2075
    %v2077 = vadd.f32 %v2076, 1.0
    %v2078 = vrcp.pop %v2077
    %v2079 = vmul.f32 %v2077, %v2078
    %v2080 = vsub.f32 1.0, %v2079
    %v2081 = vmul.f32 %v2078, %v2080
    %v2082 = vadd.f32 %v2078, %v2081
    %vm2083 = vweird.f32 %v2077
    %vm2084 = vweird.f32 %v2078
    %vm2085 = vmor %vm2083, %vm2084
    %v2086 = vsel %vm2085, %v2078, %v2082
    %v2087 = vand.u32 2147483647, %v2077
    %vm2088 = vcmp.eq.f32.partialorder %v2087, 8.507059e+37
    %v2089 = vand.u32 %v2077, 2147483648
    %v2090 = vor.u32 1.1754944e-38, %v2089
    %v2091 = vsel %vm2088, %v2090, %v2086
    %v2092 = vmul.f32 1.0, %v2091
    %v2093 = vadd.f32 %v2071, %v481
    %2095 = vrot.lane.b32.xlu0 %v2093, 64
    %v2096 = vpop.permute.xlu0 %2095
    %v2098 = vmul.f32 %v2092, %v2096
    %2100 = vrot.lane.b32.xlu0 %v2098, 64
    %v2101 = vpop.permute.xlu0 %2100
    %v2103 = vadd.f32 %v2047, %v2101
    %v2104 = vtanh.pop %v2103
    %v2105 = vsub.f32 %v2045, %v2104
    %2107 = vrot.lane.b32.xlu0 %v2105, 96
    %v2108 = vpop.permute.xlu0 %2107
    %v2110 = vmul.f32 %v2092, %v2108
    %2112 = vrot.lane.b32.xlu0 %v2110, 32
    %v2113 = vpop.permute.xlu0 %2112
    %v2115 = vadd.f32 %v2104, %v2113
    %2117 = vrot.lane.b32.xlu0 %v2115, 64
    %v2118 = vpop.permute.xlu0 %2117
    %2120 = vst.msk [vmem:[#allocation9] sm:$0xff] %vm123, %v2118
    // Predicated region
    $region54: #{tpu_custom_call.1} parent=1 // pred_check
      _
    $region55: #{tpu_custom_call.1} parent=1 // pred_check_branch
      %2122 = sbr.rel (0) target = $region57
    $region56: #{tpu_custom_call.1} parent=1 // pred_region
      %2124 = vsyncadd [#allocation5], 0
      %s2126 = sshll.u32 [#allocation9], 4
      %s2127 = int_to_ptr.vmem [resolvable:$true] %s2126
      %s2128 = sshll.u32 %s10, 4
      %s2129 = int_to_ptr.hbm [resolvable:$true] %s2128
      %2131 = dma.vmem_to_hbm [thread:$0]  %s2127, 128, %s2129, [#allocation5]
    $region57: #{tpu_custom_call.1} parent=1 // pred_fallthru
      _
    // Predicated region
    $region58: #{tpu_custom_call.1} parent=1 // pred_check
      _
    $region59: #{tpu_custom_call.1} parent=1 // pred_check_branch
      %2133 = sbr.rel (0) target = $region61
    $region60: #{tpu_custom_call.1} parent=1 // pred_region
      %2135 = dma.done [#allocation5], 128
    $region61: #{tpu_custom_call.1} parent=1 // pred_fallthru
      _
    %2136 = vsyncpa [#allocation4], 1
    %2137 = vsyncpa [#allocation7], 1
    %2138 = vsyncpa [#allocation5], 1

</llo_original>
